<compile_context>
chip_gen: v6e
topology: v6e:2x2x1
jax: 0.10.0
libtpu: 0.0.40
codegen_flags: <defaults>
</compile_context>

<pallas_src>
import numpy as np
import jax
import jax.numpy as jnp
from jax import lax
from jax.experimental import pallas as pl
from jax.experimental.pallas import tpu as pltpu


def lstm_mean_chunk_kernel(x_ref, len_ref, wih_ref, whh_ref, b_ref, out_ref,
                           xg_sc, h_sc, c_sc):
    TB, D = x_ref.shape               # (Tc*Bblk, D), possibly bf16
    Bb, H = out_ref.shape             # (Bblk, H), f32
    Tc = TB // Bb
    t_blk = pl.program_id(1)
    n_tblk = pl.num_programs(1)

    # ---- init carried state + pooled accumulator at the first time chunk ----
    @pl.when(t_blk == 0)
    def _init():
        h_sc[...] = jnp.zeros_like(h_sc)
        c_sc[...] = jnp.zeros_like(c_sc)
        out_ref[...] = jnp.zeros_like(out_ref)      # pooled-sum accumulator

    # ---- chunk-hoisted, time-independent input projection (one MXU push) ----
    # (Tc*Bblk, D) @ (D, 4H) + bias, f32 accumulation regardless of input dtype.
    xg_sc[...] = (jnp.dot(x_ref[...], wih_ref[...],
                          preferred_element_type=jnp.float32)
                  + b_ref[...])

    # Hoist loop-invariant loads out of the recurrence.
    whh = whh_ref[...]                # (H, 4H) f32
    lens = len_ref[...]               # (Bb, 1) int32
    t0 = t_blk * Tc

    def step(t, carry):
        h, c, acc = carry
        row = pl.multiple_of(t * Bb, 8)                       # aligned sublane slice
        gate_x = xg_sc[pl.ds(row, Bb), :]                     # (Bb, 4H)
        gates = gate_x + jnp.dot(h, whh,
                                 preferred_element_type=jnp.float32)
        # sigmoid in tanh form: one EUP pass over all 4H lanes, no f32 divide
        # on the serial chain.  tanh only on the g gate columns.
        sig = 0.5 * jnp.tanh(0.5 * gates) + 0.5
        i_g = sig[:, 0 * H:1 * H]
        f_g = sig[:, 1 * H:2 * H]
        o_g = sig[:, 3 * H:4 * H]
        g_g = jnp.tanh(gates[:, 2 * H:3 * H])
        c = f_g * c + i_g * g_g
        h = o_g * jnp.tanh(c)
        # Packed-sequence masking as a single select (no int->f32 convert/mul).
        acc = jnp.where(lens > (t0 + t), acc + h, acc)
        return (h, c, acc)

    h, c, acc = lax.fori_loop(0, Tc, step,
                              (h_sc[...], c_sc[...], out_ref[...]),
                              unroll=True)
    h_sc[...] = h
    c_sc[...] = c
    out_ref[...] = acc                # pooled sum so far (output-resident)

    # ---- finalize: masked mean (guard zero lengths of padded batch rows) ----
    @pl.when(t_blk == n_tblk - 1)
    def _finalize():
        inv_len = 1.0 / jnp.maximum(lens.astype(jnp.float32), 1.0)
        out_ref[...] = acc * inv_len


def rand_lstm_forward(x_tbd, lengths, w_ih, w_hh, b_ih, b_hh, *,
                      time_chunk=8, batch_block=8,
                      matmul_dtype=jnp.float32):
    """x_tbd: (T, B, D) f32, lengths: (B,) int.  Returns (B, H) f32.

    matmul_dtype: dtype for the bulk input-projection MXU operands (x, W_ih^T).
    bf16 gives 2-4x on the MXU with f32 accumulation but loosens parity vs. an
    f32 reference to ~1e-2; the default keeps strict f32 accuracy.
    """
    T, B, D = x_tbd.shape
    H = w_hh.shape[1]

    B_blk = batch_block                            # multiple of 8 sublanes
    B_pad = -(-B // B_blk) * B_blk
    Tc = min(time_chunk, T)
    T_pad = -(-T // Tc) * Tc
    n_bblk = B_pad // B_blk
    n_tblk = T_pad // Tc

    # Pad batch (length 0 => zero output, sliced off) and time (masked by lens).
    x = jnp.asarray(x_tbd, jnp.float32)
    x = jnp.pad(x, ((0, T_pad - T), (0, B_pad - B), (0, 0)))
    # Arrange as (n_bblk, T_pad*B_blk, D): rows of each batch block are
    # contiguous in (time, batch-in-block) order, so every kernel block is a
    # plain 2-D (Tc*B_blk, D) slab (no in-kernel reshape).
    x = (x.reshape(T_pad, n_bblk, B_blk, D)
          .transpose(1, 0, 2, 3)
          .reshape(n_bblk, T_pad * B_blk, D)
          .astype(matmul_dtype))

    lens = jnp.pad(jnp.asarray(lengths, jnp.int32),
                   ((0, B_pad - B),)).reshape(B_pad, 1)
    wih_t = jnp.asarray(w_ih, jnp.float32).T.astype(matmul_dtype)   # (D, 4H)
    whh_t = jnp.asarray(w_hh, jnp.float32).T                        # (H, 4H) f32
    bias = (jnp.asarray(b_ih, jnp.float32)
            + jnp.asarray(b_hh, jnp.float32)).reshape(1, 4 * H)

    grid_spec = pltpu.PrefetchScalarGridSpec(
        num_scalar_prefetch=0,
        grid=(n_bblk, n_tblk),                     # (parallel batch, serial time)
        in_specs=[
            pl.BlockSpec((None, Tc * B_blk, D), lambda b, t: (b, t, 0)),  # x chunk
            pl.BlockSpec((B_blk, 1), lambda b, t: (b, 0)),                # lengths
            pl.BlockSpec((D, 4 * H), lambda b, t: (0, 0)),                # W_ih^T
            pl.BlockSpec((H, 4 * H), lambda b, t: (0, 0)),                # W_hh^T
            pl.BlockSpec((1, 4 * H), lambda b, t: (0, 0)),                # bias
        ],
        out_specs=pl.BlockSpec((B_blk, H), lambda b, t: (b, 0)),
        scratch_shapes=[
            pltpu.VMEM((Tc * B_blk, 4 * H), jnp.float32),   # x @ W_ih^T + b (chunk)
            pltpu.VMEM((B_blk, H), jnp.float32),            # h carried across chunks
            pltpu.VMEM((B_blk, H), jnp.float32),            # c carried across chunks
        ],
    )

    flops = 2 * T_pad * B_pad * D * 4 * H + 2 * T_pad * B_pad * H * 4 * H
    transcendentals = 6 * T_pad * B_pad * H
    bytes_accessed = int(x.size * x.dtype.itemsize
                         + wih_t.size * wih_t.dtype.itemsize
                         + whh_t.size * 4 + bias.size * 4
                         + lens.size * 4 + B_pad * H * 4)

    out = pl.pallas_call(
        lstm_mean_chunk_kernel,
        out_shape=jax.ShapeDtypeStruct((B_pad, H), jnp.float32),
        grid_spec=grid_spec,
        compiler_params=pltpu.CompilerParams(
            dimension_semantics=("parallel", "arbitrary"),
            vmem_limit_bytes=32 * 1024 * 1024),
        cost_estimate=pl.CostEstimate(flops=int(flops),
                                      transcendentals=int(transcendentals),
                                      bytes_accessed=bytes_accessed),
    )(x, lens, wih_t, whh_t, bias)
    return out[:B]


def reference_forward(x_tbd, lengths, w_ih, w_hh, b_ih, b_hh):
    """Pure-JAX reference (same math as torch.nn.LSTM + mean_pool)."""

    def step(carry, x_t):
        h, c = carry
        gates = x_t @ w_ih.T + h @ w_hh.T + b_ih + b_hh
        i, f, g, o = jnp.split(gates, 4, axis=-1)
        i = jax.nn.sigmoid(i)
        f = jax.nn.sigmoid(f)
        g = jnp.tanh(g)
        o = jax.nn.sigmoid(o)
        c = f * c + i * g
        h = o * jnp.tanh(c)
        return (h, c), h

    T, B, D = x_tbd.shape
    H = w_hh.shape[1]
    init = (jnp.zeros((B, H), jnp.float32), jnp.zeros((B, H), jnp.float32))
    _, hs = jax.lax.scan(step, init, x_tbd)               # (T, B, H)
    mask = (jnp.arange(T)[:, None] < lengths[None, :]).astype(jnp.float32)
    return (hs * mask[:, :, None]).sum(0) / lengths.astype(jnp.float32)[:, None]


if __name__ == "__main__":
    key = jax.random.PRNGKey(0)
    # Small, module-consistent shapes: batch B=2 sentences, feature dim D=64,
    # LSTM hidden H=32, padded sequence length T=16 (stands in for max_seq_len=128).
    B, D, H, T = 2, 64, 32, 16
    lengths_list = [11, 16]

    k = jax.random.split(key, 6)

    # gen_embedding: each sentence is a (len_i, D) word-embedding array, padded
    # with zeros up to T.
    sents = [jax.random.normal(k[i], (lengths_list[i], D), jnp.float32)
             for i in range(B)]
    x_btd = jnp.stack([
        jnp.concatenate([s, jnp.zeros((T - s.shape[0], D), jnp.float32)], axis=0)
        for s in sents])                                  # (B, T, D), batch_first
    x_tbd = jnp.transpose(x_btd, (1, 0, 2))               # (T, B, D), time-major
    lengths = jnp.array(lengths_list, dtype=jnp.int32)

    # Deterministic parameter init: xavier_uniform for 2-D weights (as in the
    # module's __init__), default uniform(-1/sqrt(H), 1/sqrt(H)) for biases.
    def xavier(kk, shape):
        fan_out, fan_in = shape
        lim = float(np.sqrt(6.0 / (fan_in + fan_out)))
        return jax.random.uniform(kk, shape, jnp.float32, -lim, lim)

    w_ih = xavier(k[2], (4 * H, D))                       # weight_ih_l0
    w_hh = xavier(k[3], (4 * H, H))                       # weight_hh_l0
    blim = 1.0 / float(np.sqrt(H))
    b_ih = jax.random.uniform(k[4], (4 * H,), jnp.float32, -blim, blim)
    b_hh = jax.random.uniform(k[5], (4 * H,), jnp.float32, -blim, blim)

    ref = reference_forward(x_tbd, lengths, w_ih, w_hh, b_ih, b_hh)

    # f32 MXU path: strict parity with the reference.
    out = rand_lstm_forward(x_tbd, lengths, w_ih, w_hh, b_ih, b_hh)
    out = jax.block_until_ready(out)
    assert out.shape == (B, H)
    np.testing.assert_allclose(np.asarray(out), np.asarray(ref),
                               rtol=1e-4, atol=1e-4)

    # bf16-MXU path (review item): relaxed tolerance as noted in the review.
    out_bf16 = jax.block_until_ready(
        rand_lstm_forward(x_tbd, lengths, w_ih, w_hh, b_ih, b_hh,
                          matmul_dtype=jnp.bfloat16))
    np.testing.assert_allclose(np.asarray(out_bf16), np.asarray(ref),
                               rtol=5e-2, atol=5e-2)

    print("KERNEL_OK")
</pallas_src>

<mosaic_0001>
module attributes {stable_mosaic.version = 11 : i64} {
  func.func @lstm_mean_chunk_kernel(%arg0: i32, %arg1: i32, %arg2: memref<1x64x64xf32, #tpu.memory_space<vmem>>, %arg3: memref<8x1xi32, #tpu.memory_space<vmem>>, %arg4: memref<64x128xf32, #tpu.memory_space<vmem>>, %arg5: memref<32x128xf32, #tpu.memory_space<vmem>>, %arg6: memref<1x128xf32, #tpu.memory_space<vmem>>, %arg7: memref<8x32xf32, #tpu.memory_space<vmem>>, %arg8: memref<64x128xf32, #tpu.memory_space<vmem>>, %arg9: memref<8x32xf32, #tpu.memory_space<vmem>>, %arg10: memref<8x32xf32, #tpu.memory_space<vmem>>) attributes {dimension_semantics = [#tpu.dimension_semantics<parallel>, #tpu.dimension_semantics<arbitrary>], iteration_bounds = array<i64: 1, 2>, scalar_prefetch = 0 : i64, scratch_operands = 3 : i64, tpu.core_type = #tpu.core_type<tc>, window_params = [{transform_indices = @transform_0, window_bounds = array<i64: 1, 64, 64>}, {transform_indices = @transform_1, window_bounds = array<i64: 8, 1>}, {pipeline_mode = #tpu.pipeline_mode<synchronous>, transform_indices = @transform_2, window_bounds = array<i64: 64, 128>}, {pipeline_mode = #tpu.pipeline_mode<synchronous>, transform_indices = @transform_3, window_bounds = array<i64: 32, 128>}, {pipeline_mode = #tpu.pipeline_mode<synchronous>, transform_indices = @transform_4, window_bounds = array<i64: 1, 128>}, {transform_indices = @transform_5, window_bounds = array<i64: 8, 32>}]} {
    %c0_i32 = arith.constant 0 : i32
    %0 = arith.cmpi eq, %arg1, %c0_i32 : i32
    %1 = arith.extui %0 : i1 to i32
    %c0_i32_0 = arith.constant 0 : i32
    %2 = arith.cmpi ne, %1, %c0_i32_0 : i32
    scf.if %2 {
      %cst_77 = arith.constant 0.000000e+00 : f32
      %263 = vector.broadcast %cst_77 : f32 to vector<8x32xf32>
      %c0_78 = arith.constant 0 : index
      %c0_79 = arith.constant 0 : index
      %264 = vector.load %arg9[%c0_78, %c0_79] : memref<8x32xf32, #tpu.memory_space<vmem>>, vector<8x32xf32>
      tpu.vector_store %arg9[%c0_78, %c0_79], %263 {strides = array<i32>} : memref<8x32xf32, #tpu.memory_space<vmem>>, vector<8x32xf32>,
      %cst_80 = arith.constant 0.000000e+00 : f32
      %265 = vector.broadcast %cst_80 : f32 to vector<8x32xf32>
      %c0_81 = arith.constant 0 : index
      %c0_82 = arith.constant 0 : index
      %266 = vector.load %arg10[%c0_81, %c0_82] : memref<8x32xf32, #tpu.memory_space<vmem>>, vector<8x32xf32>
      tpu.vector_store %arg10[%c0_81, %c0_82], %265 {strides = array<i32>} : memref<8x32xf32, #tpu.memory_space<vmem>>, vector<8x32xf32>,
      %cst_83 = arith.constant 0.000000e+00 : f32
      %267 = vector.broadcast %cst_83 : f32 to vector<8x32xf32>
      %c0_84 = arith.constant 0 : index
      %c0_85 = arith.constant 0 : index
      %268 = vector.load %arg7[%c0_84, %c0_85] : memref<8x32xf32, #tpu.memory_space<vmem>>, vector<8x32xf32>
      tpu.vector_store %arg7[%c0_84, %c0_85], %267 {strides = array<i32>} : memref<8x32xf32, #tpu.memory_space<vmem>>, vector<8x32xf32>,
    } else {
    }
    %c0 = arith.constant 0 : index
    %c0_1 = arith.constant 0 : index
    %c0_2 = arith.constant 0 : index
    %3 = vector.load %arg2[%c0, %c0_1, %c0_2] : memref<1x64x64xf32, #tpu.memory_space<vmem>>, vector<1x64x64xf32>
    %4 = vector.shape_cast %3 : vector<1x64x64xf32> to vector<64x64xf32>
    %c0_3 = arith.constant 0 : index
    %c0_4 = arith.constant 0 : index
    %5 = vector.load %arg4[%c0_3, %c0_4] : memref<64x128xf32, #tpu.memory_space<vmem>>, vector<64x128xf32>
    %cst = arith.constant dense<0.000000e+00> : vector<64x128xf32>
    %6 = tpu.matmul %4, %5, %cst {dimension_numbers = #tpu.dot_dimension_numbers<[1], [0], [0], [1], [0, 0, 1, 1], [], []>} : vector<64x64xf32>, vector<64x128xf32>, vector<64x128xf32> -> vector<64x128xf32>
    %c0_5 = arith.constant 0 : index
    %c0_6 = arith.constant 0 : index
    %7 = vector.load %arg6[%c0_5, %c0_6] : memref<1x128xf32, #tpu.memory_space<vmem>>, vector<1x128xf32>
    %8 = vector.broadcast %7 : vector<1x128xf32> to vector<64x128xf32>
    %9 = arith.addf %6, %8 : vector<64x128xf32>
    %c0_7 = arith.constant 0 : index
    %c0_8 = arith.constant 0 : index
    %10 = vector.load %arg8[%c0_7, %c0_8] : memref<64x128xf32, #tpu.memory_space<vmem>>, vector<64x128xf32>
    tpu.vector_store %arg8[%c0_7, %c0_8], %9 {strides = array<i32>} : memref<64x128xf32, #tpu.memory_space<vmem>>, vector<64x128xf32>,
    %c0_9 = arith.constant 0 : index
    %c0_10 = arith.constant 0 : index
    %11 = vector.load %arg5[%c0_9, %c0_10] : memref<32x128xf32, #tpu.memory_space<vmem>>, vector<32x128xf32>
    %c0_11 = arith.constant 0 : index
    %c0_12 = arith.constant 0 : index
    %12 = vector.load %arg3[%c0_11, %c0_12] : memref<8x1xi32, #tpu.memory_space<vmem>>, vector<8x1xi32>
    %c8_i32 = arith.constant 8 : i32
    %13 = arith.muli %arg1, %c8_i32 : i32
    %c0_13 = arith.constant 0 : index
    %c0_14 = arith.constant 0 : index
    %14 = vector.load %arg9[%c0_13, %c0_14] : memref<8x32xf32, #tpu.memory_space<vmem>>, vector<8x32xf32>
    %c0_15 = arith.constant 0 : index
    %c0_16 = arith.constant 0 : index
    %15 = vector.load %arg10[%c0_15, %c0_16] : memref<8x32xf32, #tpu.memory_space<vmem>>, vector<8x32xf32>
    %c0_17 = arith.constant 0 : index
    %c0_18 = arith.constant 0 : index
    %16 = vector.load %arg7[%c0_17, %c0_18] : memref<8x32xf32, #tpu.memory_space<vmem>>, vector<8x32xf32>
    %c0_i32_19 = arith.constant 0 : i32
    %c8_i32_20 = arith.constant 8 : i32
    %17 = arith.muli %c0_i32_19, %c8_i32_20 : i32
    %18 = tpu.assume_multiple %17, 8 : i32
    %19 = arith.index_cast %18 : i32 to index
    %c0_21 = arith.constant 0 : index
    %20 = vector.load %arg8[%19, %c0_21] : memref<64x128xf32, #tpu.memory_space<vmem>>, vector<8x128xf32>
    %cst_22 = arith.constant dense<0.000000e+00> : vector<8x128xf32>
    %21 = tpu.matmul %14, %11, %cst_22 {dimension_numbers = #tpu.dot_dimension_numbers<[1], [0], [0], [1], [0, 0, 1, 1], [], []>} : vector<8x32xf32>, vector<32x128xf32>, vector<8x128xf32> -> vector<8x128xf32>
    %22 = arith.addf %20, %21 : vector<8x128xf32>
    %cst_23 = arith.constant 5.000000e-01 : f32
    %23 = vector.broadcast %cst_23 : f32 to vector<8x128xf32>
    %24 = arith.mulf %23, %22 : vector<8x128xf32>
    %25 = math.tanh %24 : vector<8x128xf32>
    %cst_24 = arith.constant 5.000000e-01 : f32
    %26 = vector.broadcast %cst_24 : f32 to vector<8x128xf32>
    %27 = arith.mulf %26, %25 : vector<8x128xf32>
    %cst_25 = arith.constant 5.000000e-01 : f32
    %28 = vector.broadcast %cst_25 : f32 to vector<8x128xf32>
    %29 = arith.addf %27, %28 : vector<8x128xf32>
    %30 = vector.extract_strided_slice %29 {offsets = [0, 0], sizes = [8, 32], strides = [1, 1]} : vector<8x128xf32> to vector<8x32xf32>
    %31 = vector.extract_strided_slice %29 {offsets = [0, 32], sizes = [8, 32], strides = [1, 1]} : vector<8x128xf32> to vector<8x32xf32>
    %32 = vector.extract_strided_slice %29 {offsets = [0, 96], sizes = [8, 32], strides = [1, 1]} : vector<8x128xf32> to vector<8x32xf32>
    %33 = vector.extract_strided_slice %22 {offsets = [0, 64], sizes = [8, 32], strides = [1, 1]} : vector<8x128xf32> to vector<8x32xf32>
    %34 = math.tanh %33 : vector<8x32xf32>
    %35 = arith.mulf %31, %15 : vector<8x32xf32>
    %36 = arith.mulf %30, %34 : vector<8x32xf32>
    %37 = arith.addf %35, %36 : vector<8x32xf32>
    %38 = math.tanh %37 : vector<8x32xf32>
    %39 = arith.mulf %32, %38 : vector<8x32xf32>
    %40 = arith.addi %13, %c0_i32_19 : i32
    %41 = vector.broadcast %40 : i32 to vector<8x1xi32>
    %42 = arith.cmpi sgt, %12, %41 : vector<8x1xi32>
    %43 = arith.addf %16, %39 : vector<8x32xf32>
    %44 = vector.shape_cast %42 : vector<8x1xi1> to vector<8x1xi1>
    %45 = vector.broadcast %44 : vector<8x1xi1> to vector<8x32xi1>
    %46 = arith.select %45, %43, %16 : vector<8x32xi1>, vector<8x32xf32>
    %c1_i32 = arith.constant 1 : i32
    %c8_i32_26 = arith.constant 8 : i32
    %47 = arith.muli %c1_i32, %c8_i32_26 : i32
    %48 = tpu.assume_multiple %47, 8 : i32
    %49 = arith.index_cast %48 : i32 to index
    %c0_27 = arith.constant 0 : index
    %50 = vector.load %arg8[%49, %c0_27] : memref<64x128xf32, #tpu.memory_space<vmem>>, vector<8x128xf32>
    %cst_28 = arith.constant dense<0.000000e+00> : vector<8x128xf32>
    %51 = tpu.matmul %39, %11, %cst_28 {dimension_numbers = #tpu.dot_dimension_numbers<[1], [0], [0], [1], [0, 0, 1, 1], [], []>} : vector<8x32xf32>, vector<32x128xf32>, vector<8x128xf32> -> vector<8x128xf32>
    %52 = arith.addf %50, %51 : vector<8x128xf32>
    %cst_29 = arith.constant 5.000000e-01 : f32
    %53 = vector.broadcast %cst_29 : f32 to vector<8x128xf32>
    %54 = arith.mulf %53, %52 : vector<8x128xf32>
    %55 = math.tanh %54 : vector<8x128xf32>
    %cst_30 = arith.constant 5.000000e-01 : f32
    %56 = vector.broadcast %cst_30 : f32 to vector<8x128xf32>
    %57 = arith.mulf %56, %55 : vector<8x128xf32>
    %cst_31 = arith.constant 5.000000e-01 : f32
    %58 = vector.broadcast %cst_31 : f32 to vector<8x128xf32>
    %59 = arith.addf %57, %58 : vector<8x128xf32>
    %60 = vector.extract_strided_slice %59 {offsets = [0, 0], sizes = [8, 32], strides = [1, 1]} : vector<8x128xf32> to vector<8x32xf32>
    %61 = vector.extract_strided_slice %59 {offsets = [0, 32], sizes = [8, 32], strides = [1, 1]} : vector<8x128xf32> to vector<8x32xf32>
    %62 = vector.extract_strided_slice %59 {offsets = [0, 96], sizes = [8, 32], strides = [1, 1]} : vector<8x128xf32> to vector<8x32xf32>
    %63 = vector.extract_strided_slice %52 {offsets = [0, 64], sizes = [8, 32], strides = [1, 1]} : vector<8x128xf32> to vector<8x32xf32>
    %64 = math.tanh %63 : vector<8x32xf32>
    %65 = arith.mulf %61, %37 : vector<8x32xf32>
    %66 = arith.mulf %60, %64 : vector<8x32xf32>
    %67 = arith.addf %65, %66 : vector<8x32xf32>
    %68 = math.tanh %67 : vector<8x32xf32>
    %69 = arith.mulf %62, %68 : vector<8x32xf32>
    %70 = arith.addi %13, %c1_i32 : i32
    %71 = vector.broadcast %70 : i32 to vector<8x1xi32>
    %72 = arith.cmpi sgt, %12, %71 : vector<8x1xi32>
    %73 = arith.addf %46, %69 : vector<8x32xf32>
    %74 = vector.shape_cast %72 : vector<8x1xi1> to vector<8x1xi1>
    %75 = vector.broadcast %74 : vector<8x1xi1> to vector<8x32xi1>
    %76 = arith.select %75, %73, %46 : vector<8x32xi1>, vector<8x32xf32>
    %c2_i32 = arith.constant 2 : i32
    %c8_i32_32 = arith.constant 8 : i32
    %77 = arith.muli %c2_i32, %c8_i32_32 : i32
    %78 = tpu.assume_multiple %77, 8 : i32
    %79 = arith.index_cast %78 : i32 to index
    %c0_33 = arith.constant 0 : index
    %80 = vector.load %arg8[%79, %c0_33] : memref<64x128xf32, #tpu.memory_space<vmem>>, vector<8x128xf32>
    %cst_34 = arith.constant dense<0.000000e+00> : vector<8x128xf32>
    %81 = tpu.matmul %69, %11, %cst_34 {dimension_numbers = #tpu.dot_dimension_numbers<[1], [0], [0], [1], [0, 0, 1, 1], [], []>} : vector<8x32xf32>, vector<32x128xf32>, vector<8x128xf32> -> vector<8x128xf32>
    %82 = arith.addf %80, %81 : vector<8x128xf32>
    %cst_35 = arith.constant 5.000000e-01 : f32
    %83 = vector.broadcast %cst_35 : f32 to vector<8x128xf32>
    %84 = arith.mulf %83, %82 : vector<8x128xf32>
    %85 = math.tanh %84 : vector<8x128xf32>
    %cst_36 = arith.constant 5.000000e-01 : f32
    %86 = vector.broadcast %cst_36 : f32 to vector<8x128xf32>
    %87 = arith.mulf %86, %85 : vector<8x128xf32>
    %cst_37 = arith.constant 5.000000e-01 : f32
    %88 = vector.broadcast %cst_37 : f32 to vector<8x128xf32>
    %89 = arith.addf %87, %88 : vector<8x128xf32>
    %90 = vector.extract_strided_slice %89 {offsets = [0, 0], sizes = [8, 32], strides = [1, 1]} : vector<8x128xf32> to vector<8x32xf32>
    %91 = vector.extract_strided_slice %89 {offsets = [0, 32], sizes = [8, 32], strides = [1, 1]} : vector<8x128xf32> to vector<8x32xf32>
    %92 = vector.extract_strided_slice %89 {offsets = [0, 96], sizes = [8, 32], strides = [1, 1]} : vector<8x128xf32> to vector<8x32xf32>
    %93 = vector.extract_strided_slice %82 {offsets = [0, 64], sizes = [8, 32], strides = [1, 1]} : vector<8x128xf32> to vector<8x32xf32>
    %94 = math.tanh %93 : vector<8x32xf32>
    %95 = arith.mulf %91, %67 : vector<8x32xf32>
    %96 = arith.mulf %90, %94 : vector<8x32xf32>
    %97 = arith.addf %95, %96 : vector<8x32xf32>
    %98 = math.tanh %97 : vector<8x32xf32>
    %99 = arith.mulf %92, %98 : vector<8x32xf32>
    %100 = arith.addi %13, %c2_i32 : i32
    %101 = vector.broadcast %100 : i32 to vector<8x1xi32>
    %102 = arith.cmpi sgt, %12, %101 : vector<8x1xi32>
    %103 = arith.addf %76, %99 : vector<8x32xf32>
    %104 = vector.shape_cast %102 : vector<8x1xi1> to vector<8x1xi1>
    %105 = vector.broadcast %104 : vector<8x1xi1> to vector<8x32xi1>
    %106 = arith.select %105, %103, %76 : vector<8x32xi1>, vector<8x32xf32>
    %c3_i32 = arith.constant 3 : i32
    %c8_i32_38 = arith.constant 8 : i32
    %107 = arith.muli %c3_i32, %c8_i32_38 : i32
    %108 = tpu.assume_multiple %107, 8 : i32
    %109 = arith.index_cast %108 : i32 to index
    %c0_39 = arith.constant 0 : index
    %110 = vector.load %arg8[%109, %c0_39] : memref<64x128xf32, #tpu.memory_space<vmem>>, vector<8x128xf32>
    %cst_40 = arith.constant dense<0.000000e+00> : vector<8x128xf32>
    %111 = tpu.matmul %99, %11, %cst_40 {dimension_numbers = #tpu.dot_dimension_numbers<[1], [0], [0], [1], [0, 0, 1, 1], [], []>} : vector<8x32xf32>, vector<32x128xf32>, vector<8x128xf32> -> vector<8x128xf32>
    %112 = arith.addf %110, %111 : vector<8x128xf32>
    %cst_41 = arith.constant 5.000000e-01 : f32
    %113 = vector.broadcast %cst_41 : f32 to vector<8x128xf32>
    %114 = arith.mulf %113, %112 : vector<8x128xf32>
    %115 = math.tanh %114 : vector<8x128xf32>
    %cst_42 = arith.constant 5.000000e-01 : f32
    %116 = vector.broadcast %cst_42 : f32 to vector<8x128xf32>
    %117 = arith.mulf %116, %115 : vector<8x128xf32>
    %cst_43 = arith.constant 5.000000e-01 : f32
    %118 = vector.broadcast %cst_43 : f32 to vector<8x128xf32>
    %119 = arith.addf %117, %118 : vector<8x128xf32>
    %120 = vector.extract_strided_slice %119 {offsets = [0, 0], sizes = [8, 32], strides = [1, 1]} : vector<8x128xf32> to vector<8x32xf32>
    %121 = vector.extract_strided_slice %119 {offsets = [0, 32], sizes = [8, 32], strides = [1, 1]} : vector<8x128xf32> to vector<8x32xf32>
    %122 = vector.extract_strided_slice %119 {offsets = [0, 96], sizes = [8, 32], strides = [1, 1]} : vector<8x128xf32> to vector<8x32xf32>
    %123 = vector.extract_strided_slice %112 {offsets = [0, 64], sizes = [8, 32], strides = [1, 1]} : vector<8x128xf32> to vector<8x32xf32>
    %124 = math.tanh %123 : vector<8x32xf32>
    %125 = arith.mulf %121, %97 : vector<8x32xf32>
    %126 = arith.mulf %120, %124 : vector<8x32xf32>
    %127 = arith.addf %125, %126 : vector<8x32xf32>
    %128 = math.tanh %127 : vector<8x32xf32>
    %129 = arith.mulf %122, %128 : vector<8x32xf32>
    %130 = arith.addi %13, %c3_i32 : i32
    %131 = vector.broadcast %130 : i32 to vector<8x1xi32>
    %132 = arith.cmpi sgt, %12, %131 : vector<8x1xi32>
    %133 = arith.addf %106, %129 : vector<8x32xf32>
    %134 = vector.shape_cast %132 : vector<8x1xi1> to vector<8x1xi1>
    %135 = vector.broadcast %134 : vector<8x1xi1> to vector<8x32xi1>
    %136 = arith.select %135, %133, %106 : vector<8x32xi1>, vector<8x32xf32>
    %c4_i32 = arith.constant 4 : i32
    %c8_i32_44 = arith.constant 8 : i32
    %137 = arith.muli %c4_i32, %c8_i32_44 : i32
    %138 = tpu.assume_multiple %137, 8 : i32
    %139 = arith.index_cast %138 : i32 to index
    %c0_45 = arith.constant 0 : index
    %140 = vector.load %arg8[%139, %c0_45] : memref<64x128xf32, #tpu.memory_space<vmem>>, vector<8x128xf32>
    %cst_46 = arith.constant dense<0.000000e+00> : vector<8x128xf32>
    %141 = tpu.matmul %129, %11, %cst_46 {dimension_numbers = #tpu.dot_dimension_numbers<[1], [0], [0], [1], [0, 0, 1, 1], [], []>} : vector<8x32xf32>, vector<32x128xf32>, vector<8x128xf32> -> vector<8x128xf32>
    %142 = arith.addf %140, %141 : vector<8x128xf32>
    %cst_47 = arith.constant 5.000000e-01 : f32
    %143 = vector.broadcast %cst_47 : f32 to vector<8x128xf32>
    %144 = arith.mulf %143, %142 : vector<8x128xf32>
    %145 = math.tanh %144 : vector<8x128xf32>
    %cst_48 = arith.constant 5.000000e-01 : f32
    %146 = vector.broadcast %cst_48 : f32 to vector<8x128xf32>
    %147 = arith.mulf %146, %145 : vector<8x128xf32>
    %cst_49 = arith.constant 5.000000e-01 : f32
    %148 = vector.broadcast %cst_49 : f32 to vector<8x128xf32>
    %149 = arith.addf %147, %148 : vector<8x128xf32>
    %150 = vector.extract_strided_slice %149 {offsets = [0, 0], sizes = [8, 32], strides = [1, 1]} : vector<8x128xf32> to vector<8x32xf32>
    %151 = vector.extract_strided_slice %149 {offsets = [0, 32], sizes = [8, 32], strides = [1, 1]} : vector<8x128xf32> to vector<8x32xf32>
    %152 = vector.extract_strided_slice %149 {offsets = [0, 96], sizes = [8, 32], strides = [1, 1]} : vector<8x128xf32> to vector<8x32xf32>
    %153 = vector.extract_strided_slice %142 {offsets = [0, 64], sizes = [8, 32], strides = [1, 1]} : vector<8x128xf32> to vector<8x32xf32>
    %154 = math.tanh %153 : vector<8x32xf32>
    %155 = arith.mulf %151, %127 : vector<8x32xf32>
    %156 = arith.mulf %150, %154 : vector<8x32xf32>
    %157 = arith.addf %155, %156 : vector<8x32xf32>
    %158 = math.tanh %157 : vector<8x32xf32>
    %159 = arith.mulf %152, %158 : vector<8x32xf32>
    %160 = arith.addi %13, %c4_i32 : i32
    %161 = vector.broadcast %160 : i32 to vector<8x1xi32>
    %162 = arith.cmpi sgt, %12, %161 : vector<8x1xi32>
    %163 = arith.addf %136, %159 : vector<8x32xf32>
    %164 = vector.shape_cast %162 : vector<8x1xi1> to vector<8x1xi1>
    %165 = vector.broadcast %164 : vector<8x1xi1> to vector<8x32xi1>
    %166 = arith.select %165, %163, %136 : vector<8x32xi1>, vector<8x32xf32>
    %c5_i32 = arith.constant 5 : i32
    %c8_i32_50 = arith.constant 8 : i32
    %167 = arith.muli %c5_i32, %c8_i32_50 : i32
    %168 = tpu.assume_multiple %167, 8 : i32
    %169 = arith.index_cast %168 : i32 to index
    %c0_51 = arith.constant 0 : index
    %170 = vector.load %arg8[%169, %c0_51] : memref<64x128xf32, #tpu.memory_space<vmem>>, vector<8x128xf32>
    %cst_52 = arith.constant dense<0.000000e+00> : vector<8x128xf32>
    %171 = tpu.matmul %159, %11, %cst_52 {dimension_numbers = #tpu.dot_dimension_numbers<[1], [0], [0], [1], [0, 0, 1, 1], [], []>} : vector<8x32xf32>, vector<32x128xf32>, vector<8x128xf32> -> vector<8x128xf32>
    %172 = arith.addf %170, %171 : vector<8x128xf32>
    %cst_53 = arith.constant 5.000000e-01 : f32
    %173 = vector.broadcast %cst_53 : f32 to vector<8x128xf32>
    %174 = arith.mulf %173, %172 : vector<8x128xf32>
    %175 = math.tanh %174 : vector<8x128xf32>
    %cst_54 = arith.constant 5.000000e-01 : f32
    %176 = vector.broadcast %cst_54 : f32 to vector<8x128xf32>
    %177 = arith.mulf %176, %175 : vector<8x128xf32>
    %cst_55 = arith.constant 5.000000e-01 : f32
    %178 = vector.broadcast %cst_55 : f32 to vector<8x128xf32>
    %179 = arith.addf %177, %178 : vector<8x128xf32>
    %180 = vector.extract_strided_slice %179 {offsets = [0, 0], sizes = [8, 32], strides = [1, 1]} : vector<8x128xf32> to vector<8x32xf32>
    %181 = vector.extract_strided_slice %179 {offsets = [0, 32], sizes = [8, 32], strides = [1, 1]} : vector<8x128xf32> to vector<8x32xf32>
    %182 = vector.extract_strided_slice %179 {offsets = [0, 96], sizes = [8, 32], strides = [1, 1]} : vector<8x128xf32> to vector<8x32xf32>
    %183 = vector.extract_strided_slice %172 {offsets = [0, 64], sizes = [8, 32], strides = [1, 1]} : vector<8x128xf32> to vector<8x32xf32>
    %184 = math.tanh %183 : vector<8x32xf32>
    %185 = arith.mulf %181, %157 : vector<8x32xf32>
    %186 = arith.mulf %180, %184 : vector<8x32xf32>
    %187 = arith.addf %185, %186 : vector<8x32xf32>
    %188 = math.tanh %187 : vector<8x32xf32>
    %189 = arith.mulf %182, %188 : vector<8x32xf32>
    %190 = arith.addi %13, %c5_i32 : i32
    %191 = vector.broadcast %190 : i32 to vector<8x1xi32>
    %192 = arith.cmpi sgt, %12, %191 : vector<8x1xi32>
    %193 = arith.addf %166, %189 : vector<8x32xf32>
    %194 = vector.shape_cast %192 : vector<8x1xi1> to vector<8x1xi1>
    %195 = vector.broadcast %194 : vector<8x1xi1> to vector<8x32xi1>
    %196 = arith.select %195, %193, %166 : vector<8x32xi1>, vector<8x32xf32>
    %c6_i32 = arith.constant 6 : i32
    %c8_i32_56 = arith.constant 8 : i32
    %197 = arith.muli %c6_i32, %c8_i32_56 : i32
    %198 = tpu.assume_multiple %197, 8 : i32
    %199 = arith.index_cast %198 : i32 to index
    %c0_57 = arith.constant 0 : index
    %200 = vector.load %arg8[%199, %c0_57] : memref<64x128xf32, #tpu.memory_space<vmem>>, vector<8x128xf32>
    %cst_58 = arith.constant dense<0.000000e+00> : vector<8x128xf32>
    %201 = tpu.matmul %189, %11, %cst_58 {dimension_numbers = #tpu.dot_dimension_numbers<[1], [0], [0], [1], [0, 0, 1, 1], [], []>} : vector<8x32xf32>, vector<32x128xf32>, vector<8x128xf32> -> vector<8x128xf32>
    %202 = arith.addf %200, %201 : vector<8x128xf32>
    %cst_59 = arith.constant 5.000000e-01 : f32
    %203 = vector.broadcast %cst_59 : f32 to vector<8x128xf32>
    %204 = arith.mulf %203, %202 : vector<8x128xf32>
    %205 = math.tanh %204 : vector<8x128xf32>
    %cst_60 = arith.constant 5.000000e-01 : f32
    %206 = vector.broadcast %cst_60 : f32 to vector<8x128xf32>
    %207 = arith.mulf %206, %205 : vector<8x128xf32>
    %cst_61 = arith.constant 5.000000e-01 : f32
    %208 = vector.broadcast %cst_61 : f32 to vector<8x128xf32>
    %209 = arith.addf %207, %208 : vector<8x128xf32>
    %210 = vector.extract_strided_slice %209 {offsets = [0, 0], sizes = [8, 32], strides = [1, 1]} : vector<8x128xf32> to vector<8x32xf32>
    %211 = vector.extract_strided_slice %209 {offsets = [0, 32], sizes = [8, 32], strides = [1, 1]} : vector<8x128xf32> to vector<8x32xf32>
    %212 = vector.extract_strided_slice %209 {offsets = [0, 96], sizes = [8, 32], strides = [1, 1]} : vector<8x128xf32> to vector<8x32xf32>
    %213 = vector.extract_strided_slice %202 {offsets = [0, 64], sizes = [8, 32], strides = [1, 1]} : vector<8x128xf32> to vector<8x32xf32>
    %214 = math.tanh %213 : vector<8x32xf32>
    %215 = arith.mulf %211, %187 : vector<8x32xf32>
    %216 = arith.mulf %210, %214 : vector<8x32xf32>
    %217 = arith.addf %215, %216 : vector<8x32xf32>
    %218 = math.tanh %217 : vector<8x32xf32>
    %219 = arith.mulf %212, %218 : vector<8x32xf32>
    %220 = arith.addi %13, %c6_i32 : i32
    %221 = vector.broadcast %220 : i32 to vector<8x1xi32>
    %222 = arith.cmpi sgt, %12, %221 : vector<8x1xi32>
    %223 = arith.addf %196, %219 : vector<8x32xf32>
    %224 = vector.shape_cast %222 : vector<8x1xi1> to vector<8x1xi1>
    %225 = vector.broadcast %224 : vector<8x1xi1> to vector<8x32xi1>
    %226 = arith.select %225, %223, %196 : vector<8x32xi1>, vector<8x32xf32>
    %c7_i32 = arith.constant 7 : i32
    %c8_i32_62 = arith.constant 8 : i32
    %227 = arith.muli %c7_i32, %c8_i32_62 : i32
    %228 = tpu.assume_multiple %227, 8 : i32
    %229 = arith.index_cast %228 : i32 to index
    %c0_63 = arith.constant 0 : index
    %230 = vector.load %arg8[%229, %c0_63] : memref<64x128xf32, #tpu.memory_space<vmem>>, vector<8x128xf32>
    %cst_64 = arith.constant dense<0.000000e+00> : vector<8x128xf32>
    %231 = tpu.matmul %219, %11, %cst_64 {dimension_numbers = #tpu.dot_dimension_numbers<[1], [0], [0], [1], [0, 0, 1, 1], [], []>} : vector<8x32xf32>, vector<32x128xf32>, vector<8x128xf32> -> vector<8x128xf32>
    %232 = arith.addf %230, %231 : vector<8x128xf32>
    %cst_65 = arith.constant 5.000000e-01 : f32
    %233 = vector.broadcast %cst_65 : f32 to vector<8x128xf32>
    %234 = arith.mulf %233, %232 : vector<8x128xf32>
    %235 = math.tanh %234 : vector<8x128xf32>
    %cst_66 = arith.constant 5.000000e-01 : f32
    %236 = vector.broadcast %cst_66 : f32 to vector<8x128xf32>
    %237 = arith.mulf %236, %235 : vector<8x128xf32>
    %cst_67 = arith.constant 5.000000e-01 : f32
    %238 = vector.broadcast %cst_67 : f32 to vector<8x128xf32>
    %239 = arith.addf %237, %238 : vector<8x128xf32>
    %240 = vector.extract_strided_slice %239 {offsets = [0, 0], sizes = [8, 32], strides = [1, 1]} : vector<8x128xf32> to vector<8x32xf32>
    %241 = vector.extract_strided_slice %239 {offsets = [0, 32], sizes = [8, 32], strides = [1, 1]} : vector<8x128xf32> to vector<8x32xf32>
    %242 = vector.extract_strided_slice %239 {offsets = [0, 96], sizes = [8, 32], strides = [1, 1]} : vector<8x128xf32> to vector<8x32xf32>
    %243 = vector.extract_strided_slice %232 {offsets = [0, 64], sizes = [8, 32], strides = [1, 1]} : vector<8x128xf32> to vector<8x32xf32>
    %244 = math.tanh %243 : vector<8x32xf32>
    %245 = arith.mulf %241, %217 : vector<8x32xf32>
    %246 = arith.mulf %240, %244 : vector<8x32xf32>
    %247 = arith.addf %245, %246 : vector<8x32xf32>
    %248 = math.tanh %247 : vector<8x32xf32>
    %249 = arith.mulf %242, %248 : vector<8x32xf32>
    %250 = arith.addi %13, %c7_i32 : i32
    %251 = vector.broadcast %250 : i32 to vector<8x1xi32>
    %252 = arith.cmpi sgt, %12, %251 : vector<8x1xi32>
    %253 = arith.addf %226, %249 : vector<8x32xf32>
    %254 = vector.shape_cast %252 : vector<8x1xi1> to vector<8x1xi1>
    %255 = vector.broadcast %254 : vector<8x1xi1> to vector<8x32xi1>
    %256 = arith.select %255, %253, %226 : vector<8x32xi1>, vector<8x32xf32>
    %c8_i32_68 = arith.constant 8 : i32
    %c0_69 = arith.constant 0 : index
    %c0_70 = arith.constant 0 : index
    %257 = vector.load %arg9[%c0_69, %c0_70] : memref<8x32xf32, #tpu.memory_space<vmem>>, vector<8x32xf32>
    tpu.vector_store %arg9[%c0_69, %c0_70], %249 {strides = array<i32>} : memref<8x32xf32, #tpu.memory_space<vmem>>, vector<8x32xf32>,
    %c0_71 = arith.constant 0 : index
    %c0_72 = arith.constant 0 : index
    %258 = vector.load %arg10[%c0_71, %c0_72] : memref<8x32xf32, #tpu.memory_space<vmem>>, vector<8x32xf32>
    tpu.vector_store %arg10[%c0_71, %c0_72], %247 {strides = array<i32>} : memref<8x32xf32, #tpu.memory_space<vmem>>, vector<8x32xf32>,
    %c0_73 = arith.constant 0 : index
    %c0_74 = arith.constant 0 : index
    %259 = vector.load %arg7[%c0_73, %c0_74] : memref<8x32xf32, #tpu.memory_space<vmem>>, vector<8x32xf32>
    tpu.vector_store %arg7[%c0_73, %c0_74], %256 {strides = array<i32>} : memref<8x32xf32, #tpu.memory_space<vmem>>, vector<8x32xf32>,
    %c1_i32_75 = arith.constant 1 : i32
    %260 = arith.cmpi eq, %arg1, %c1_i32_75 : i32
    %261 = arith.extui %260 : i1 to i32
    %c0_i32_76 = arith.constant 0 : i32
    %262 = arith.cmpi ne, %261, %c0_i32_76 : i32
    scf.if %262 {
      %263 = arith.sitofp %12 : vector<8x1xi32> to vector<8x1xf32>
      %cst_77 = arith.constant 1.000000e+00 : f32
      %264 = vector.broadcast %cst_77 : f32 to vector<8x1xf32>
      %265 = arith.maximumf %263, %264 : vector<8x1xf32>
      %cst_78 = arith.constant 1.000000e+00 : f32
      %266 = vector.broadcast %cst_78 : f32 to vector<8x1xf32>
      %267 = arith.divf %266, %265 : vector<8x1xf32>
      %268 = vector.broadcast %267 : vector<8x1xf32> to vector<8x32xf32>
      %269 = arith.mulf %256, %268 : vector<8x32xf32>
      %c0_79 = arith.constant 0 : index
      %c0_80 = arith.constant 0 : index
      %270 = vector.load %arg7[%c0_79, %c0_80] : memref<8x32xf32, #tpu.memory_space<vmem>>, vector<8x32xf32>
      tpu.vector_store %arg7[%c0_79, %c0_80], %269 {strides = array<i32>} : memref<8x32xf32, #tpu.memory_space<vmem>>, vector<8x32xf32>,
    } else {
    }
    return
  }
  func.func @transform_0(%arg0: i32, %arg1: i32) -> (i32, i32, i32) {
    %c0_i32 = arith.constant 0 : i32
    %c0_i32_0 = arith.constant 0 : i32
    return %arg0, %arg1, %c0_i32 : i32, i32, i32
  }
  func.func @transform_1(%arg0: i32, %arg1: i32) -> (i32, i32) {
    %c0_i32 = arith.constant 0 : i32
    %c0_i32_0 = arith.constant 0 : i32
    return %arg0, %c0_i32 : i32, i32
  }
  func.func @transform_2(%arg0: i32, %arg1: i32) -> (i32, i32) {
    %c0_i32 = arith.constant 0 : i32
    %c0_i32_0 = arith.constant 0 : i32
    %c0_i32_1 = arith.constant 0 : i32
    return %c0_i32, %c0_i32_0 : i32, i32
  }
  func.func @transform_3(%arg0: i32, %arg1: i32) -> (i32, i32) {
    %c0_i32 = arith.constant 0 : i32
    %c0_i32_0 = arith.constant 0 : i32
    %c0_i32_1 = arith.constant 0 : i32
    return %c0_i32, %c0_i32_0 : i32, i32
  }
  func.func @transform_4(%arg0: i32, %arg1: i32) -> (i32, i32) {
    %c0_i32 = arith.constant 0 : i32
    %c0_i32_0 = arith.constant 0 : i32
    %c0_i32_1 = arith.constant 0 : i32
    return %c0_i32, %c0_i32_0 : i32, i32
  }
  func.func @transform_5(%arg0: i32, %arg1: i32) -> (i32, i32) {
    %c0_i32 = arith.constant 0 : i32
    %c0_i32_0 = arith.constant 0 : i32
    return %arg0, %c0_i32 : i32, i32
  }
}

</mosaic_0001>

<llo_original>
// kernel: tpu_custom_call.1
$region0: #{tpu_custom_call.1}
  #allocation0 [shape = 'u32[]', space=smem, size = 0x4, offset = 0x4, fixed_abs, tag = 'smem constant byte address 0x4 - core index']
  #allocation1 [shape = 'u32[144,128]{1,0:T(1,128)}', space=vmem, size = 0x12000, scoped, tag = 'internal scratch']
  #allocation2 [shape = 'f32[64,128]{1,0:T(8,128)}', space=vmem, size = 0x8000, scoped, tag = 'scratch operand']
  #allocation3 [shape = 'f32[8,32]{1,0:T(8,128)}', space=vmem, size = 0x1000, scoped, tag = 'scratch operand']
  #allocation4 [shape = 'f32[8,32]{1,0:T(8,128)}', space=vmem, size = 0x1000, scoped, tag = 'scratch operand']
  %s0 = inlined_call_operand.vmem [shape: f32[1,128,64], index: 0, kind: input, shape index: {}]
  %s1 = inlined_call_operand.vmem [shape: s32[8,1], index: 1, kind: input, shape index: {}]
  %s2 = inlined_call_operand.vmem [shape: f32[64,128], index: 2, kind: input, shape index: {}]
  %s3 = inlined_call_operand.vmem [shape: f32[32,128], index: 3, kind: input, shape index: {}]
  %s4 = inlined_call_operand.vmem [shape: f32[1,128], index: 4, kind: input, shape index: {}]
  %s5 = inlined_call_operand.hbm [shape: f32[8,32], index: 5, kind: output, shape index: {}]
  %s6 = sld [smem:[#allocation0]]
  $region61: #{tpu_custom_call.1} parent=0
    _
  %s8 = ssub.s32 1, %s6
  %s9 = scalar_select 0, %s8, %s6
  $region1: #{tpu_custom_call.1} parent=0
    #allocation5 [shape = 'u8[4096]{0}', space=vmem, size = 0x1000, scoped, tag = 'output window, operand 0, single buffered']
    #allocation6 [shape = 's32[2]{0}', space=sflag, size = 0x8, scoped, tag = 'scoped memory for tpu_custom_call.1']
    %10 = vsyncpa [#allocation6], 0
    loop: start=0, step=1, limit=4
    $region2: #{tpu_custom_call.1} parent=1 // loop_pre_header
      _
    $region3: #{tpu_custom_call.1} parent=1 // loop_header
      %s12 = sphi 0, %s16
      %p13 = scmp.ge.s32.totalorder %s12, 4
      %s19 = sphi 0, %s31
      %s20 = sphi 0, %s27
      %s21 = sphi 0, %s19
      %s22 = sphi 0, %s20
      %s23 = sphi 0, %s21
      %s24 = sphi 0, %s22
      %s36 = sphi 0, %s38
      %s39 = sphi 0, %s36
      %s40 = sphi 0, %s39
      %s56 = sphi 0, %s40
      %s62 = sphi 0, %s64
      %s65 = sphi 0, %s62
      %s66 = sphi 0, %s65
      %s82 = sphi 0, %s66
      %s86 = sphi 0, %s86
      %s88 = sphi 0, %s86
      %s89 = sphi 0, %s88
      %s103 = sphi 0, %s89
      %s107 = sphi 0, %s107
      %s109 = sphi 0, %s107
      %s110 = sphi 0, %s109
      %s124 = sphi 0, %s110
      %s128 = sphi 0, %s128
      %s130 = sphi 0, %s128
      %s131 = sphi 0, %s130
      %s145 = sphi 0, %s131
      %s151 = sphi 0, %s153
      %s154 = sphi 0, %s151
      %s155 = sphi 0, %s154
      %s171 = sphi 0, %s155
    $region4: #{tpu_custom_call.1} parent=1 // loop_header_branch
      %15 = sbr.rel (%p13) target = $region8
    $region5: #{tpu_custom_call.1} parent=1 // loop_body
      %s17 = ssub.s32 %s12, 1
      %s18 = ssub.s32 %s12, 2
      %s25 = sadd.s32 1, %s20
      %p26 = scmp.ge.s32.totalorder %s25, 2
      %s27 = scalar_select %p26, 0, %s25
      %s28 = sadd.s32 1, %s19
      %s29 = scalar_select %p26, %s28, %s19
      %p30 = scmp.ge.s32.totalorder %s29, 1
      %s31 = scalar_select %p30, 0, %s29
      %s32 = ssub.s32 %s19, %s31
      %s33 = ssub.s32 %s20, %s27
      %s34 = sor.u32 %s32, %s33
      %p35 = scmp.eq.s32.totalorder %s34, 0
      %s37 = sadd.s32 %s36, 1
      %s38 = scalar_select %p35, %s36, %s37
      %p41 = pneg %p35
      %p42 = scmp.eq.s32.totalorder %s12, 1
      %p43 = por %p41, %p42
      %p44 = scmp.ne.s32.totalorder %s36, %s39
      %p45 = scmp.eq.s32.totalorder %s12, 0
      %p46 = por %p44, %p45
      %p47 = scmp.ne.s32.totalorder %s36, %s39
      %p48 = scmp.eq.s32.totalorder %s17, 1
      %p49 = por %p47, %p48
      %p50 = scmp.ne.s32.totalorder %s39, %s40
      %p51 = scmp.eq.s32.totalorder %s17, 0
      %p52 = por %p50, %p51
      %p53 = scmp.ne.s32.totalorder %s39, %s40
      %p54 = scmp.eq.s32.totalorder %s18, 1
      %p55 = por %p53, %p54
      %p57 = scmp.ne.s32.totalorder %s40, %s56
      %p58 = scmp.eq.s32.totalorder %s18, 0
      %p59 = por %p57, %p58
      %s60 = ssub.s32 %s19, %s31
      %p61 = scmp.eq.s32.totalorder %s60, 0
      %s63 = sadd.s32 %s62, 1
      %s64 = scalar_select %p61, %s62, %s63
      %p67 = pneg %p61
      %p68 = scmp.eq.s32.totalorder %s12, 1
      %p69 = por %p67, %p68
      %p70 = scmp.ne.s32.totalorder %s62, %s65
      %p71 = scmp.eq.s32.totalorder %s12, 0
      %p72 = por %p70, %p71
      %p73 = scmp.ne.s32.totalorder %s62, %s65
      %p74 = scmp.eq.s32.totalorder %s17, 1
      %p75 = por %p73, %p74
      %p76 = scmp.ne.s32.totalorder %s65, %s66
      %p77 = scmp.eq.s32.totalorder %s17, 0
      %p78 = por %p76, %p77
      %p79 = scmp.ne.s32.totalorder %s65, %s66
      %p80 = scmp.eq.s32.totalorder %s18, 1
      %p81 = por %p79, %p80
      %p83 = scmp.ne.s32.totalorder %s66, %s82
      %p84 = scmp.eq.s32.totalorder %s18, 0
      %p85 = por %p83, %p84
      %s87 = sadd.s32 %s86, 1
      %p90 = scmp.eq.s32.totalorder %s12, 1
      %p91 = scmp.ne.s32.totalorder %s86, %s88
      %p92 = scmp.eq.s32.totalorder %s12, 0
      %p93 = por %p91, %p92
      %p94 = scmp.ne.s32.totalorder %s86, %s88
      %p95 = scmp.eq.s32.totalorder %s17, 1
      %p96 = por %p94, %p95
      %p97 = scmp.ne.s32.totalorder %s88, %s89
      %p98 = scmp.eq.s32.totalorder %s17, 0
      %p99 = por %p97, %p98
      %p100 = scmp.ne.s32.totalorder %s88, %s89
      %p101 = scmp.eq.s32.totalorder %s18, 1
      %p102 = por %p100, %p101
      %p104 = scmp.ne.s32.totalorder %s89, %s103
      %p105 = scmp.eq.s32.totalorder %s18, 0
      %p106 = por %p104, %p105
      %s108 = sadd.s32 %s107, 1
      %p111 = scmp.eq.s32.totalorder %s12, 1
      %p112 = scmp.ne.s32.totalorder %s107, %s109
      %p113 = scmp.eq.s32.totalorder %s12, 0
      %p114 = por %p112, %p113
      %p115 = scmp.ne.s32.totalorder %s107, %s109
      %p116 = scmp.eq.s32.totalorder %s17, 1
      %p117 = por %p115, %p116
      %p118 = scmp.ne.s32.totalorder %s109, %s110
      %p119 = scmp.eq.s32.totalorder %s17, 0
      %p120 = por %p118, %p119
      %p121 = scmp.ne.s32.totalorder %s109, %s110
      %p122 = scmp.eq.s32.totalorder %s18, 1
      %p123 = por %p121, %p122
      %p125 = scmp.ne.s32.totalorder %s110, %s124
      %p126 = scmp.eq.s32.totalorder %s18, 0
      %p127 = por %p125, %p126
      %s129 = sadd.s32 %s128, 1
      %p132 = scmp.eq.s32.totalorder %s12, 1
      %p133 = scmp.ne.s32.totalorder %s128, %s130
      %p134 = scmp.eq.s32.totalorder %s12, 0
      %p135 = por %p133, %p134
      %p136 = scmp.ne.s32.totalorder %s128, %s130
      %p137 = scmp.eq.s32.totalorder %s17, 1
      %p138 = por %p136, %p137
      %p139 = scmp.ne.s32.totalorder %s130, %s131
      %p140 = scmp.eq.s32.totalorder %s17, 0
      %p141 = por %p139, %p140
      %p142 = scmp.ne.s32.totalorder %s130, %s131
      %p143 = scmp.eq.s32.totalorder %s18, 1
      %p144 = por %p142, %p143
      %p146 = scmp.ne.s32.totalorder %s131, %s145
      %p147 = scmp.eq.s32.totalorder %s18, 0
      %p148 = por %p146, %p147
      %s149 = ssub.s32 %s19, %s31
      %p150 = scmp.eq.s32.totalorder %s149, 0
      %s152 = sadd.s32 %s151, 1
      %s153 = scalar_select %p150, %s151, %s152
      %p156 = pneg %p150
      %p157 = scmp.eq.s32.totalorder %s12, 1
      %p158 = por %p156, %p157
      %p159 = scmp.ne.s32.totalorder %s151, %s154
      %p160 = scmp.eq.s32.totalorder %s12, 0
      %p161 = por %p159, %p160
      %p162 = scmp.ne.s32.totalorder %s151, %s154
      %p163 = scmp.eq.s32.totalorder %s17, 1
      %p164 = por %p162, %p163
      %p165 = scmp.ne.s32.totalorder %s154, %s155
      %p166 = scmp.eq.s32.totalorder %s17, 0
      %p167 = por %p165, %p166
      %p168 = scmp.ne.s32.totalorder %s154, %s155
      %p169 = scmp.eq.s32.totalorder %s18, 1
      %p170 = por %p168, %p169
      %p172 = scmp.ne.s32.totalorder %s155, %s171
      %p173 = scmp.eq.s32.totalorder %s18, 0
      %p174 = por %p172, %p173
      %p175 = scmp.le.s32.totalorder 1, %s12
      %p176 = scmp.lt.s32.totalorder %s12, 3
      %p177 = pnand %p175, %p176
      %p178 = pneg %p177
      // Predicated region
      $region9: #{tpu_custom_call.1} parent=5 // pred_check
        _
      $region10: #{tpu_custom_call.1} parent=5 // pred_check_branch
        %180 = sbr.rel (%p177) target = $region12
      $region11: #{tpu_custom_call.1} parent=5 // pred_region
        %s181 = ssub.s32 %s12, 1
        // Predicated region
        $region13: #{tpu_custom_call.1} parent=11 // pred_check
          %p182 = pneg %p78
        $region14: #{tpu_custom_call.1} parent=11 // pred_check_branch
          %184 = sbr.rel (%p182) target = $region16
        $region15: #{tpu_custom_call.1} parent=11 // pred_region
          %p185 = scmp.lt.s32.totalorder %s21, 0
          %s186 = scalar_select %p185, %s21, 0
          %s187 = smul.addr %s186, 8
          %s188 = scalar_lea.vmem %s1, %s187
        $region16: #{tpu_custom_call.1} parent=11 // pred_fallthru
          _
        // Predicated region
        $region17: #{tpu_custom_call.1} parent=11 // pred_check
          %p189 = pneg %p99
        $region18: #{tpu_custom_call.1} parent=11 // pred_check_branch
          %191 = sbr.rel (%p189) target = $region20
        $region19: #{tpu_custom_call.1} parent=11 // pred_region
          _
        $region20: #{tpu_custom_call.1} parent=11 // pred_fallthru
          _
        // Predicated region
        $region21: #{tpu_custom_call.1} parent=11 // pred_check
          %p192 = pneg %p120
        $region22: #{tpu_custom_call.1} parent=11 // pred_check_branch
          %194 = sbr.rel (%p192) target = $region24
        $region23: #{tpu_custom_call.1} parent=11 // pred_region
          _
        $region24: #{tpu_custom_call.1} parent=11 // pred_fallthru
          _
        // Predicated region
        $region25: #{tpu_custom_call.1} parent=11 // pred_check
          %p195 = pneg %p141
        $region26: #{tpu_custom_call.1} parent=11 // pred_check_branch
          %197 = sbr.rel (%p195) target = $region28
        $region27: #{tpu_custom_call.1} parent=11 // pred_region
          _
        $region28: #{tpu_custom_call.1} parent=11 // pred_fallthru
          _
      $region12: #{tpu_custom_call.1} parent=5 // pred_fallthru
        _
      %p198 = scmp.lt.s32.totalorder %s12, 2
      // Predicated region
      $region29: #{tpu_custom_call.1} parent=5 // pred_check
        %p199 = pneg %p198
      $region30: #{tpu_custom_call.1} parent=5 // pred_check_branch
        %201 = sbr.rel (%p199) target = $region32
      $region31: #{tpu_custom_call.1} parent=5 // pred_region
        // Predicated region
        $region33: #{tpu_custom_call.1} parent=31 // pred_check
          %p202 = pneg %p46
        $region34: #{tpu_custom_call.1} parent=31 // pred_check_branch
          %204 = sbr.rel (%p202) target = $region36
        $region35: #{tpu_custom_call.1} parent=31 // pred_region
          %s205 = smul.u32 8, %s20
          %p206 = scmp.lt.s32.totalorder %s19, 0
          %s207 = scalar_select %p206, %s19, 0
          %p208 = scmp.lt.s32.totalorder %s205, 15
          %s209 = scalar_select %p208, %s205, 15
          %s210 = smul.addr %s207, 16
          %s211 = sadd.s32 %s209, %s210
          %s212 = smul.addr %s211, 8
          %s213 = scalar_lea.vmem %s0, %s212
          %s214 = smul.u32 8, %s20
        $region36: #{tpu_custom_call.1} parent=31 // pred_fallthru
          _
      $region32: #{tpu_custom_call.1} parent=5 // pred_fallthru
        _
      %p215 = scmp.le.s32.totalorder 1, %s12
      %p216 = scmp.lt.s32.totalorder %s12, 3
      %p217 = pnand %p215, %p216
      %p218 = pneg %p217
      // Predicated region
      $region37: #{tpu_custom_call.1} parent=5 // pred_check
        _
      $region38: #{tpu_custom_call.1} parent=5 // pred_check_branch
        %220 = sbr.rel (%p217) target = $region40
      $region39: #{tpu_custom_call.1} parent=5 // pred_region
        %s221 = ssub.s32 %s12, 1
        %s222 = smul.u32 8, %s22
        %p223 = scmp.lt.s32.totalorder %s21, 0
        %s224 = scalar_select %p223, %s21, 0
        %p225 = scmp.lt.s32.totalorder %s222, 15
        %s226 = scalar_select %p225, %s222, 15
        %s227 = smul.addr %s224, 16
        %s228 = sadd.s32 %s226, %s227
        %s229 = smul.addr %s228, 8
        %s230 = scalar_lea.vmem %s0, %s229
        %p231 = pneg %p52
        %p232 = pneg %p49
        %p233 = scmp.lt.s32.totalorder %s21, 0
        %s234 = scalar_select %p233, %s21, 0
        %s235 = smul.addr %s234, 8
        %s236 = scalar_lea.vmem %s1, %s235
        %p237 = pneg %p78
        %p238 = pneg %p75
        %p239 = pneg %p99
        %p240 = pneg %p96
        %p241 = pneg %p120
        %p242 = pneg %p117
        %p243 = pneg %p141
        %p244 = pneg %p138
        %p245 = pneg %p167
        %p246 = pneg %p164
        %s247 = smul.u32 8, %s22
        %p248 = scmp.lt.s32.totalorder %s21, 0
        %s249 = scalar_select %p248, %s21, 0
        %p250 = scmp.lt.s32.totalorder %s247, 15
        %s251 = scalar_select %p250, %s247, 15
        %s252 = smul.addr %s249, 16
        %s253 = sadd.s32 %s251, %s252
        %s254 = smul.addr %s253, 8
        %s255 = scalar_lea.vmem %s0, %s254
        %s256 = smul.u32 8, %s22
        %p257 = scmp.lt.s32.totalorder %s21, 0
        %s258 = scalar_select %p257, %s21, 0
        %s259 = smul.addr %s258, 8
        %s260 = scalar_lea.vmem %s1, %s259
        %p261 = scmp.eq.s32.totalorder %s22, 0
        // Predicated region
        $region41: #{tpu_custom_call.1} parent=39 // pred_check
          %p262 = pneg %p261
        $region42: #{tpu_custom_call.1} parent=39 // pred_check_branch
          %264 = sbr.rel (%p262) target = $region44
        $region43: #{tpu_custom_call.1} parent=39 // pred_region
          %vm265 = vcmask 261120
          %266 = vst.msk [vmem:[#allocation3] sm:$0xff] %vm265, 0.0
          %267 = vst.msk [vmem:[#allocation4] sm:$0xff] %vm265, 0.0
          %268 = vst.msk [vmem:[#allocation5] sm:$0xff] %vm265, 0.0
        $region44: #{tpu_custom_call.1} parent=39 // pred_fallthru
          _
        %v269 = vld [vmem:[%s255] sm:$0xff]
        %v270 = vld [vmem:[%s255 + $0x8] sm:$0xff]
        %v271 = vld [vmem:[%s255 + $0x10] sm:$0xff]
        %v272 = vld [vmem:[%s255 + $0x18] sm:$0xff]
        %v273 = vld [vmem:[%s255 + $0x20] sm:$0xff]
        %v274 = vld [vmem:[%s255 + $0x28] sm:$0xff]
        %v275 = vld [vmem:[%s255 + $0x30] sm:$0xff]
        %v276 = vld [vmem:[%s255 + $0x38] sm:$0xff]
        %v277 = vld [vmem:[%s2] sm:$0xff]
        %v278 = vld [vmem:[%s2 + $0x8] sm:$0xff]
        %v279 = vld [vmem:[%s2 + $0x10] sm:$0xff]
        %v280 = vld [vmem:[%s2 + $0x18] sm:$0xff]
        %v281 = vld [vmem:[%s2 + $0x20] sm:$0xff]
        %v282 = vld [vmem:[%s2 + $0x28] sm:$0xff]
        %v283 = vld [vmem:[%s2 + $0x30] sm:$0xff]
        %v284 = vld [vmem:[%s2 + $0x38] sm:$0xff]
        %v285 = vld [vmem:[%s4] sm:$0x1]
        %v287 = vlaneseq
        %v288 = vshrl.u32 %v287, 7
        %v289 = vsub.s32 0, %v288
        %v290 = vrot.slane %v285, %v289
        %vm292 = vcmask 523264
        %v294 = vsel %vm292, %v269, 0
        %v297 = vsel %vm292, %v270, 0
        %v300 = vsel %vm292, %v271, 0
        %v303 = vsel %vm292, %v272, 0
        %v306 = vsel %vm292, %v273, 0
        %v309 = vsel %vm292, %v274, 0
        %v312 = vsel %vm292, %v275, 0
        %v315 = vsel %vm292, %v276, 0
        %317 = vmatprep.subr.mxu0 0.0
        %318 = vmatpush1.msra.mxu0 0.0
        %319 = vmatprep.subr.mxu0 0.0
        %320 = vmatpush1.msra.mxu0 0.0
        %321 = vmatprep.subr.mxu0 0.0
        %322 = vmatpush1.msra.mxu0 0.0
        %323 = vmatprep.subr.mxu0 0.0
        %324 = vmatpush1.msra.mxu0 0.0
        %325 = vmatprep.subr.mxu0 0.0
        %326 = vmatpush1.msra.mxu0 0.0
        %327 = vmatprep.subr.mxu0 0.0
        %328 = vmatpush1.msra.mxu0 0.0
        %329 = vmatprep.subr.mxu0 0.0
        %330 = vmatpush1.msra.mxu0 0.0
        %331 = vmatprep.subr.mxu0 0.0
        %332 = vmatpush1.msra.mxu0 0.0
        %333 = vmatprep.subr.mxu0 0.0
        %334 = vmatpush1.msra.mxu0 %v284
        %335 = vmatprep.subr.mxu0 0.0
        %336 = vmatpush1.msra.mxu0 %v283
        %337 = vmatprep.subr.mxu0 0.0
        %338 = vmatpush1.msra.mxu0 %v282
        %339 = vmatprep.subr.mxu0 0.0
        %340 = vmatpush1.msra.mxu0 %v281
        %341 = vmatprep.subr.mxu0 0.0
        %342 = vmatpush1.msra.mxu0 %v280
        %343 = vmatprep.subr.mxu0 0.0
        %344 = vmatpush1.msra.mxu0 %v279
        %345 = vmatprep.subr.mxu0 0.0
        %346 = vmatpush1.msra.mxu0 %v278
        %347 = vmatprep.subr.mxu0 0.0
        %348 = vmatpush1.msra.mxu0 %v277
        %349 = vmatprep.subr.mxu0 0.0
        %350 = vmatpush2.msra.mxu0 0.0
        %351 = vmatprep.subr.mxu0 0.0
        %352 = vmatpush2.msra.mxu0 0.0
        %353 = vmatprep.subr.mxu0 0.0
        %354 = vmatpush2.msra.mxu0 0.0
        %355 = vmatprep.subr.mxu0 0.0
        %356 = vmatpush2.msra.mxu0 0.0
        %357 = vmatprep.subr.mxu0 0.0
        %358 = vmatpush2.msra.mxu0 0.0
        %359 = vmatprep.subr.mxu0 0.0
        %360 = vmatpush2.msra.mxu0 0.0
        %361 = vmatprep.subr.mxu0 0.0
        %362 = vmatpush2.msra.mxu0 0.0
        %363 = vmatprep.subr.mxu0 0.0
        %364 = vmatpush2.msra.mxu0 0.0
        %365 = vmatprep.subr.mxu0 0.0
        %366 = vmatpush2.msra.mxu0 0.0
        %367 = vmatprep.subr.mxu0 0.0
        %368 = vmatpush2.msra.mxu0 0.0
        %369 = vmatprep.subr.mxu0 0.0
        %370 = vmatpush2.msra.mxu0 0.0
        %371 = vmatprep.subr.mxu0 0.0
        %372 = vmatpush2.msra.mxu0 0.0
        %373 = vmatprep.subr.mxu0 0.0
        %374 = vmatpush2.msra.mxu0 0.0
        %375 = vmatprep.subr.mxu0 0.0
        %376 = vmatpush2.msra.mxu0 0.0
        %377 = vmatprep.subr.mxu0 0.0
        %378 = vmatpush2.msra.mxu0 0.0
        %379 = vmatprep.subr.mxu0 0.0
        %380 = vmatpush2.msra.mxu0 0.0
        %381 = vmatprep.mubr.f32.mxu0 0.0
        %382 = vmatmul.mubr.f32.gmra.mxu0 %v294
        %v383 = vpop.f32.mrf.mxu0
        %v384 = vadd.f32 %v290, %v383
        %v385 = vpop.f32.mrf.mxu0
        %386 = vmatprep.mubr.f32.mxu0 0.0
        %387 = vmatmul.mubr.f32.gmra.mxu0 %v297
        %v388 = vpop.f32.mrf.mxu0
        %v389 = vadd.f32 %v290, %v388
        %v390 = vpop.f32.mrf.mxu0
        %391 = vmatprep.mubr.f32.mxu0 0.0
        %392 = vmatmul.mubr.f32.gmra.mxu0 %v300
        %v393 = vpop.f32.mrf.mxu0
        %v394 = vadd.f32 %v290, %v393
        %v395 = vpop.f32.mrf.mxu0
        %396 = vmatprep.mubr.f32.mxu0 0.0
        %397 = vmatmul.mubr.f32.gmra.mxu0 %v303
        %v398 = vpop.f32.mrf.mxu0
        %v399 = vadd.f32 %v290, %v398
        %v400 = vpop.f32.mrf.mxu0
        %401 = vmatprep.mubr.f32.mxu0 0.0
        %402 = vmatmul.mubr.f32.gmra.mxu0 %v306
        %v403 = vpop.f32.mrf.mxu0
        %v404 = vadd.f32 %v290, %v403
        %v405 = vpop.f32.mrf.mxu0
        %406 = vmatprep.mubr.f32.mxu0 0.0
        %407 = vmatmul.mubr.f32.gmra.mxu0 %v309
        %v408 = vpop.f32.mrf.mxu0
        %v409 = vadd.f32 %v290, %v408
        %v410 = vpop.f32.mrf.mxu0
        %411 = vmatprep.mubr.f32.mxu0 0.0
        %412 = vmatmul.mubr.f32.gmra.mxu0 %v312
        %v413 = vpop.f32.mrf.mxu0
        %v414 = vadd.f32 %v290, %v413
        %v415 = vpop.f32.mrf.mxu0
        %416 = vmatprep.mubr.f32.mxu0 0.0
        %417 = vmatmul.mubr.f32.gmra.mxu0 %v315
        %v418 = vpop.f32.mrf.mxu0
        %v419 = vadd.f32 %v290, %v418
        %v420 = vpop.f32.mrf.mxu0
        %421 = vdwg.mxu0
        %422 = vst [vmem:[#allocation2] sm:$0xff] %v384
        %423 = vst [vmem:[#allocation2 + $0x8] sm:$0xff] %v389
        %424 = vst [vmem:[#allocation2 + $0x10] sm:$0xff] %v394
        %425 = vst [vmem:[#allocation2 + $0x18] sm:$0xff] %v399
        %426 = vst [vmem:[#allocation2 + $0x20] sm:$0xff] %v404
        %427 = vst [vmem:[#allocation2 + $0x28] sm:$0xff] %v409
        %428 = vst [vmem:[#allocation2 + $0x30] sm:$0xff] %v414
        %429 = vst [vmem:[#allocation2 + $0x38] sm:$0xff] %v419
        %v430 = vld [vmem:[%s3] sm:$0xff]
        %v431 = vld [vmem:[%s3 + $0x8] sm:$0xff]
        %v432 = vld [vmem:[%s3 + $0x10] sm:$0xff]
        %v433 = vld [vmem:[%s3 + $0x18] sm:$0xff]
        %v434 = vld [vmem:[%s260] sm:$0xff]
        %s435 = smul.u32 %s22, 8
        %v436 = vld [vmem:[#allocation3] sm:$0xff]
        %v437 = vld [vmem:[#allocation4] sm:$0xff]
        %v438 = vld [vmem:[#allocation5] sm:$0xff]
        %v439 = vld [vmem:[#allocation2] sm:$0xff]
        %vm440 = vcmask 261120
        %v442 = vsel %vm440, %v436, 0
        %444 = vmatprep.subr.mxu0 0.0
        %445 = vmatpush1.msra.mxu0 0.0
        %446 = vmatprep.subr.mxu0 0.0
        %447 = vmatpush1.msra.mxu0 0.0
        %448 = vmatprep.subr.mxu0 0.0
        %449 = vmatpush1.msra.mxu0 0.0
        %450 = vmatprep.subr.mxu0 0.0
        %451 = vmatpush1.msra.mxu0 0.0
        %452 = vmatprep.subr.mxu0 0.0
        %453 = vmatpush1.msra.mxu0 0.0
        %454 = vmatprep.subr.mxu0 0.0
        %455 = vmatpush1.msra.mxu0 0.0
        %456 = vmatprep.subr.mxu0 0.0
        %457 = vmatpush1.msra.mxu0 0.0
        %458 = vmatprep.subr.mxu0 0.0
        %459 = vmatpush1.msra.mxu0 0.0
        %460 = vmatprep.subr.mxu0 0.0
        %461 = vmatpush1.msra.mxu0 0.0
        %462 = vmatprep.subr.mxu0 0.0
        %463 = vmatpush1.msra.mxu0 0.0
        %464 = vmatprep.subr.mxu0 0.0
        %465 = vmatpush1.msra.mxu0 0.0
        %466 = vmatprep.subr.mxu0 0.0
        %467 = vmatpush1.msra.mxu0 0.0
        %468 = vmatprep.subr.mxu0 0.0
        %469 = vmatpush1.msra.mxu0 %v433
        %470 = vmatprep.subr.mxu0 0.0
        %471 = vmatpush1.msra.mxu0 %v432
        %472 = vmatprep.subr.mxu0 0.0
        %473 = vmatpush1.msra.mxu0 %v431
        %474 = vmatprep.subr.mxu0 0.0
        %475 = vmatpush1.msra.mxu0 %v430
        %476 = vmatprep.subr.mxu0 0.0
        %477 = vmatpush2.msra.mxu0 0.0
        %478 = vmatprep.subr.mxu0 0.0
        %479 = vmatpush2.msra.mxu0 0.0
        %480 = vmatprep.subr.mxu0 0.0
        %481 = vmatpush2.msra.mxu0 0.0
        %482 = vmatprep.subr.mxu0 0.0
        %483 = vmatpush2.msra.mxu0 0.0
        %484 = vmatprep.subr.mxu0 0.0
        %485 = vmatpush2.msra.mxu0 0.0
        %486 = vmatprep.subr.mxu0 0.0
        %487 = vmatpush2.msra.mxu0 0.0
        %488 = vmatprep.subr.mxu0 0.0
        %489 = vmatpush2.msra.mxu0 0.0
        %490 = vmatprep.subr.mxu0 0.0
        %491 = vmatpush2.msra.mxu0 0.0
        %492 = vmatprep.subr.mxu0 0.0
        %493 = vmatpush2.msra.mxu0 0.0
        %494 = vmatprep.subr.mxu0 0.0
        %495 = vmatpush2.msra.mxu0 0.0
        %496 = vmatprep.subr.mxu0 0.0
        %497 = vmatpush2.msra.mxu0 0.0
        %498 = vmatprep.subr.mxu0 0.0
        %499 = vmatpush2.msra.mxu0 0.0
        %500 = vmatprep.subr.mxu0 0.0
        %501 = vmatpush2.msra.mxu0 0.0
        %502 = vmatprep.subr.mxu0 0.0
        %503 = vmatpush2.msra.mxu0 0.0
        %504 = vmatprep.subr.mxu0 0.0
        %505 = vmatpush2.msra.mxu0 0.0
        %506 = vmatprep.subr.mxu0 0.0
        %507 = vmatpush2.msra.mxu0 0.0
        %508 = vmatprep.mubr.f32.mxu0 0.0
        %509 = vmatmul.mubr.f32.gmra.mxu0 %v442
        %v510 = vpop.f32.mrf.mxu0
        %v511 = vadd.f32 0.0, %v510
        %v512 = vpop.f32.mrf.mxu0
        %513 = vdwg.mxu0
        %v514 = vadd.f32 %v439, %v511
        %v515 = vmul.f32 %v514, 0.5
        %v516 = vtanh.pop %v515
        %v517 = vmul.f32 %v516, 0.5
        %v518 = vadd.f32 %v517, 0.5
        %v519 = vtanh.pop %v514
        %521 = vrot.lane.b32.xlu0 %v437, 32
        %v522 = vpop.permute.xlu0 %521
        %v524 = vmul.f32 %v518, %v522
        %526 = vrot.lane.b32.xlu0 %v519, 64
        %v527 = vpop.permute.xlu0 %526
        %v529 = vmul.f32 %v518, %v527
        %531 = vrot.lane.b32.xlu0 %v529, 32
        %v532 = vpop.permute.xlu0 %531
        %v534 = vadd.f32 %v524, %v532
        %v535 = vtanh.pop %v534
        %537 = vrot.lane.b32.xlu0 %v535, 64
        %v538 = vpop.permute.xlu0 %537
        %v540 = vmul.f32 %v518, %v538
        %v541 = vstv %s435
        %vm542 = vcmp.gt.s32.totalorder %v434, %v541
        %544 = vrot.lane.b32.xlu0 %v540, 32
        %v545 = vpop.permute.xlu0 %544
        %v547 = vadd.f32 %v438, %v545
        %v548 = vsel %vm542, 1, 0
        %549 = vset.pattern.permute.xlu0 0
        %550 = vperm.xlu0 %549, %v548
        %v551 = vpop.permute.xlu0 %550
        %vm552 = vcmp.eq.s32.totalorder %v551, 1
        %v553 = vsel %vm552, %v547, %v438
        %s554 = scalar_lea.vmem [#allocation2], 8
        %v555 = vld [vmem:[%s554] sm:$0xff]
        %v556 = vsel %vm440, %v545, 0
        %558 = vmatprep.subr.mxu0 0.0
        %559 = vmatpush1.msra.mxu0 0.0
        %560 = vmatprep.subr.mxu0 0.0
        %561 = vmatpush1.msra.mxu0 0.0
        %562 = vmatprep.subr.mxu0 0.0
        %563 = vmatpush1.msra.mxu0 0.0
        %564 = vmatprep.subr.mxu0 0.0
        %565 = vmatpush1.msra.mxu0 0.0
        %566 = vmatprep.subr.mxu0 0.0
        %567 = vmatpush1.msra.mxu0 0.0
        %568 = vmatprep.subr.mxu0 0.0
        %569 = vmatpush1.msra.mxu0 0.0
        %570 = vmatprep.subr.mxu0 0.0
        %571 = vmatpush1.msra.mxu0 0.0
        %572 = vmatprep.subr.mxu0 0.0
        %573 = vmatpush1.msra.mxu0 0.0
        %574 = vmatprep.subr.mxu0 0.0
        %575 = vmatpush1.msra.mxu0 0.0
        %576 = vmatprep.subr.mxu0 0.0
        %577 = vmatpush1.msra.mxu0 0.0
        %578 = vmatprep.subr.mxu0 0.0
        %579 = vmatpush1.msra.mxu0 0.0
        %580 = vmatprep.subr.mxu0 0.0
        %581 = vmatpush1.msra.mxu0 0.0
        %582 = vmatprep.subr.mxu0 0.0
        %583 = vmatpush1.msra.mxu0 %v433
        %584 = vmatprep.subr.mxu0 0.0
        %585 = vmatpush1.msra.mxu0 %v432
        %586 = vmatprep.subr.mxu0 0.0
        %587 = vmatpush1.msra.mxu0 %v431
        %588 = vmatprep.subr.mxu0 0.0
        %589 = vmatpush1.msra.mxu0 %v430
        %590 = vmatprep.subr.mxu0 0.0
        %591 = vmatpush2.msra.mxu0 0.0
        %592 = vmatprep.subr.mxu0 0.0
        %593 = vmatpush2.msra.mxu0 0.0
        %594 = vmatprep.subr.mxu0 0.0
        %595 = vmatpush2.msra.mxu0 0.0
        %596 = vmatprep.subr.mxu0 0.0
        %597 = vmatpush2.msra.mxu0 0.0
        %598 = vmatprep.subr.mxu0 0.0
        %599 = vmatpush2.msra.mxu0 0.0
        %600 = vmatprep.subr.mxu0 0.0
        %601 = vmatpush2.msra.mxu0 0.0
        %602 = vmatprep.subr.mxu0 0.0
        %603 = vmatpush2.msra.mxu0 0.0
        %604 = vmatprep.subr.mxu0 0.0
        %605 = vmatpush2.msra.mxu0 0.0
        %606 = vmatprep.subr.mxu0 0.0
        %607 = vmatpush2.msra.mxu0 0.0
        %608 = vmatprep.subr.mxu0 0.0
        %609 = vmatpush2.msra.mxu0 0.0
        %610 = vmatprep.subr.mxu0 0.0
        %611 = vmatpush2.msra.mxu0 0.0
        %612 = vmatprep.subr.mxu0 0.0
        %613 = vmatpush2.msra.mxu0 0.0
        %614 = vmatprep.subr.mxu0 0.0
        %615 = vmatpush2.msra.mxu0 0.0
        %616 = vmatprep.subr.mxu0 0.0
        %617 = vmatpush2.msra.mxu0 0.0
        %618 = vmatprep.subr.mxu0 0.0
        %619 = vmatpush2.msra.mxu0 0.0
        %620 = vmatprep.subr.mxu0 0.0
        %621 = vmatpush2.msra.mxu0 0.0
        %622 = vmatprep.mubr.f32.mxu0 0.0
        %623 = vmatmul.mubr.f32.gmra.mxu0 %v556
        %v624 = vpop.f32.mrf.mxu0
        %v625 = vadd.f32 0.0, %v624
        %v626 = vpop.f32.mrf.mxu0
        %627 = vdwg.mxu0
        %v628 = vadd.f32 %v555, %v625
        %v629 = vmul.f32 %v628, 0.5
        %v630 = vtanh.pop %v629
        %v631 = vmul.f32 %v630, 0.5
        %v632 = vadd.f32 %v631, 0.5
        %v633 = vtanh.pop %v628
        %v634 = vmul.f32 %v632, %v534
        %636 = vrot.lane.b32.xlu0 %v633, 64
        %v637 = vpop.permute.xlu0 %636
        %v639 = vmul.f32 %v632, %v637
        %641 = vrot.lane.b32.xlu0 %v639, 32
        %v642 = vpop.permute.xlu0 %641
        %v644 = vadd.f32 %v634, %v642
        %v645 = vtanh.pop %v644
        %647 = vrot.lane.b32.xlu0 %v645, 64
        %v648 = vpop.permute.xlu0 %647
        %v650 = vmul.f32 %v632, %v648
        %s651 = sadd.s32 %s435, 1
        %v652 = vstv %s651
        %vm653 = vcmp.gt.s32.totalorder %v434, %v652
        %655 = vrot.lane.b32.xlu0 %v650, 32
        %v656 = vpop.permute.xlu0 %655
        %v658 = vadd.f32 %v553, %v656
        %v659 = vsel %vm653, 1, 0
        %660 = vset.pattern.permute.xlu0 0
        %661 = vperm.xlu0 %660, %v659
        %v662 = vpop.permute.xlu0 %661
        %vm663 = vcmp.eq.s32.totalorder %v662, 1
        %v664 = vsel %vm663, %v658, %v553
        %s665 = scalar_lea.vmem [#allocation2], 16
        %v666 = vld [vmem:[%s665] sm:$0xff]
        %v667 = vsel %vm440, %v656, 0
        %669 = vmatprep.subr.mxu0 0.0
        %670 = vmatpush1.msra.mxu0 0.0
        %671 = vmatprep.subr.mxu0 0.0
        %672 = vmatpush1.msra.mxu0 0.0
        %673 = vmatprep.subr.mxu0 0.0
        %674 = vmatpush1.msra.mxu0 0.0
        %675 = vmatprep.subr.mxu0 0.0
        %676 = vmatpush1.msra.mxu0 0.0
        %677 = vmatprep.subr.mxu0 0.0
        %678 = vmatpush1.msra.mxu0 0.0
        %679 = vmatprep.subr.mxu0 0.0
        %680 = vmatpush1.msra.mxu0 0.0
        %681 = vmatprep.subr.mxu0 0.0
        %682 = vmatpush1.msra.mxu0 0.0
        %683 = vmatprep.subr.mxu0 0.0
        %684 = vmatpush1.msra.mxu0 0.0
        %685 = vmatprep.subr.mxu0 0.0
        %686 = vmatpush1.msra.mxu0 0.0
        %687 = vmatprep.subr.mxu0 0.0
        %688 = vmatpush1.msra.mxu0 0.0
        %689 = vmatprep.subr.mxu0 0.0
        %690 = vmatpush1.msra.mxu0 0.0
        %691 = vmatprep.subr.mxu0 0.0
        %692 = vmatpush1.msra.mxu0 0.0
        %693 = vmatprep.subr.mxu0 0.0
        %694 = vmatpush1.msra.mxu0 %v433
        %695 = vmatprep.subr.mxu0 0.0
        %696 = vmatpush1.msra.mxu0 %v432
        %697 = vmatprep.subr.mxu0 0.0
        %698 = vmatpush1.msra.mxu0 %v431
        %699 = vmatprep.subr.mxu0 0.0
        %700 = vmatpush1.msra.mxu0 %v430
        %701 = vmatprep.subr.mxu0 0.0
        %702 = vmatpush2.msra.mxu0 0.0
        %703 = vmatprep.subr.mxu0 0.0
        %704 = vmatpush2.msra.mxu0 0.0
        %705 = vmatprep.subr.mxu0 0.0
        %706 = vmatpush2.msra.mxu0 0.0
        %707 = vmatprep.subr.mxu0 0.0
        %708 = vmatpush2.msra.mxu0 0.0
        %709 = vmatprep.subr.mxu0 0.0
        %710 = vmatpush2.msra.mxu0 0.0
        %711 = vmatprep.subr.mxu0 0.0
        %712 = vmatpush2.msra.mxu0 0.0
        %713 = vmatprep.subr.mxu0 0.0
        %714 = vmatpush2.msra.mxu0 0.0
        %715 = vmatprep.subr.mxu0 0.0
        %716 = vmatpush2.msra.mxu0 0.0
        %717 = vmatprep.subr.mxu0 0.0
        %718 = vmatpush2.msra.mxu0 0.0
        %719 = vmatprep.subr.mxu0 0.0
        %720 = vmatpush2.msra.mxu0 0.0
        %721 = vmatprep.subr.mxu0 0.0
        %722 = vmatpush2.msra.mxu0 0.0
        %723 = vmatprep.subr.mxu0 0.0
        %724 = vmatpush2.msra.mxu0 0.0
        %725 = vmatprep.subr.mxu0 0.0
        %726 = vmatpush2.msra.mxu0 0.0
        %727 = vmatprep.subr.mxu0 0.0
        %728 = vmatpush2.msra.mxu0 0.0
        %729 = vmatprep.subr.mxu0 0.0
        %730 = vmatpush2.msra.mxu0 0.0
        %731 = vmatprep.subr.mxu0 0.0
        %732 = vmatpush2.msra.mxu0 0.0
        %733 = vmatprep.mubr.f32.mxu0 0.0
        %734 = vmatmul.mubr.f32.gmra.mxu0 %v667
        %v735 = vpop.f32.mrf.mxu0
        %v736 = vadd.f32 0.0, %v735
        %v737 = vpop.f32.mrf.mxu0
        %738 = vdwg.mxu0
        %v739 = vadd.f32 %v666, %v736
        %v740 = vmul.f32 %v739, 0.5
        %v741 = vtanh.pop %v740
        %v742 = vmul.f32 %v741, 0.5
        %v743 = vadd.f32 %v742, 0.5
        %v744 = vtanh.pop %v739
        %v745 = vmul.f32 %v743, %v644
        %747 = vrot.lane.b32.xlu0 %v744, 64
        %v748 = vpop.permute.xlu0 %747
        %v750 = vmul.f32 %v743, %v748
        %752 = vrot.lane.b32.xlu0 %v750, 32
        %v753 = vpop.permute.xlu0 %752
        %v755 = vadd.f32 %v745, %v753
        %v756 = vtanh.pop %v755
        %758 = vrot.lane.b32.xlu0 %v756, 64
        %v759 = vpop.permute.xlu0 %758
        %v761 = vmul.f32 %v743, %v759
        %s762 = sadd.s32 %s435, 2
        %v763 = vstv %s762
        %vm764 = vcmp.gt.s32.totalorder %v434, %v763
        %766 = vrot.lane.b32.xlu0 %v761, 32
        %v767 = vpop.permute.xlu0 %766
        %v769 = vadd.f32 %v664, %v767
        %v770 = vsel %vm764, 1, 0
        %771 = vset.pattern.permute.xlu0 0
        %772 = vperm.xlu0 %771, %v770
        %v773 = vpop.permute.xlu0 %772
        %vm774 = vcmp.eq.s32.totalorder %v773, 1
        %v775 = vsel %vm774, %v769, %v664
        %s776 = scalar_lea.vmem [#allocation2], 24
        %v777 = vld [vmem:[%s776] sm:$0xff]
        %v778 = vsel %vm440, %v767, 0
        %780 = vmatprep.subr.mxu0 0.0
        %781 = vmatpush1.msra.mxu0 0.0
        %782 = vmatprep.subr.mxu0 0.0
        %783 = vmatpush1.msra.mxu0 0.0
        %784 = vmatprep.subr.mxu0 0.0
        %785 = vmatpush1.msra.mxu0 0.0
        %786 = vmatprep.subr.mxu0 0.0
        %787 = vmatpush1.msra.mxu0 0.0
        %788 = vmatprep.subr.mxu0 0.0
        %789 = vmatpush1.msra.mxu0 0.0
        %790 = vmatprep.subr.mxu0 0.0
        %791 = vmatpush1.msra.mxu0 0.0
        %792 = vmatprep.subr.mxu0 0.0
        %793 = vmatpush1.msra.mxu0 0.0
        %794 = vmatprep.subr.mxu0 0.0
        %795 = vmatpush1.msra.mxu0 0.0
        %796 = vmatprep.subr.mxu0 0.0
        %797 = vmatpush1.msra.mxu0 0.0
        %798 = vmatprep.subr.mxu0 0.0
        %799 = vmatpush1.msra.mxu0 0.0
        %800 = vmatprep.subr.mxu0 0.0
        %801 = vmatpush1.msra.mxu0 0.0
        %802 = vmatprep.subr.mxu0 0.0
        %803 = vmatpush1.msra.mxu0 0.0
        %804 = vmatprep.subr.mxu0 0.0
        %805 = vmatpush1.msra.mxu0 %v433
        %806 = vmatprep.subr.mxu0 0.0
        %807 = vmatpush1.msra.mxu0 %v432
        %808 = vmatprep.subr.mxu0 0.0
        %809 = vmatpush1.msra.mxu0 %v431
        %810 = vmatprep.subr.mxu0 0.0
        %811 = vmatpush1.msra.mxu0 %v430
        %812 = vmatprep.subr.mxu0 0.0
        %813 = vmatpush2.msra.mxu0 0.0
        %814 = vmatprep.subr.mxu0 0.0
        %815 = vmatpush2.msra.mxu0 0.0
        %816 = vmatprep.subr.mxu0 0.0
        %817 = vmatpush2.msra.mxu0 0.0
        %818 = vmatprep.subr.mxu0 0.0
        %819 = vmatpush2.msra.mxu0 0.0
        %820 = vmatprep.subr.mxu0 0.0
        %821 = vmatpush2.msra.mxu0 0.0
        %822 = vmatprep.subr.mxu0 0.0
        %823 = vmatpush2.msra.mxu0 0.0
        %824 = vmatprep.subr.mxu0 0.0
        %825 = vmatpush2.msra.mxu0 0.0
        %826 = vmatprep.subr.mxu0 0.0
        %827 = vmatpush2.msra.mxu0 0.0
        %828 = vmatprep.subr.mxu0 0.0
        %829 = vmatpush2.msra.mxu0 0.0
        %830 = vmatprep.subr.mxu0 0.0
        %831 = vmatpush2.msra.mxu0 0.0
        %832 = vmatprep.subr.mxu0 0.0
        %833 = vmatpush2.msra.mxu0 0.0
        %834 = vmatprep.subr.mxu0 0.0
        %835 = vmatpush2.msra.mxu0 0.0
        %836 = vmatprep.subr.mxu0 0.0
        %837 = vmatpush2.msra.mxu0 0.0
        %838 = vmatprep.subr.mxu0 0.0
        %839 = vmatpush2.msra.mxu0 0.0
        %840 = vmatprep.subr.mxu0 0.0
        %841 = vmatpush2.msra.mxu0 0.0
        %842 = vmatprep.subr.mxu0 0.0
        %843 = vmatpush2.msra.mxu0 0.0
        %844 = vmatprep.mubr.f32.mxu0 0.0
        %845 = vmatmul.mubr.f32.gmra.mxu0 %v778
        %v846 = vpop.f32.mrf.mxu0
        %v847 = vadd.f32 0.0, %v846
        %v848 = vpop.f32.mrf.mxu0
        %849 = vdwg.mxu0
        %v850 = vadd.f32 %v777, %v847
        %v851 = vmul.f32 %v850, 0.5
        %v852 = vtanh.pop %v851
        %v853 = vmul.f32 %v852, 0.5
        %v854 = vadd.f32 %v853, 0.5
        %v855 = vtanh.pop %v850
        %v856 = vmul.f32 %v854, %v755
        %858 = vrot.lane.b32.xlu0 %v855, 64
        %v859 = vpop.permute.xlu0 %858
        %v861 = vmul.f32 %v854, %v859
        %863 = vrot.lane.b32.xlu0 %v861, 32
        %v864 = vpop.permute.xlu0 %863
        %v866 = vadd.f32 %v856, %v864
        %v867 = vtanh.pop %v866
        %869 = vrot.lane.b32.xlu0 %v867, 64
        %v870 = vpop.permute.xlu0 %869
        %v872 = vmul.f32 %v854, %v870
        %s873 = sadd.s32 %s435, 3
        %v874 = vstv %s873
        %vm875 = vcmp.gt.s32.totalorder %v434, %v874
        %877 = vrot.lane.b32.xlu0 %v872, 32
        %v878 = vpop.permute.xlu0 %877
        %v880 = vadd.f32 %v775, %v878
        %v881 = vsel %vm875, 1, 0
        %882 = vset.pattern.permute.xlu0 0
        %883 = vperm.xlu0 %882, %v881
        %v884 = vpop.permute.xlu0 %883
        %vm885 = vcmp.eq.s32.totalorder %v884, 1
        %v886 = vsel %vm885, %v880, %v775
        %s887 = scalar_lea.vmem [#allocation2], 32
        %v888 = vld [vmem:[%s887] sm:$0xff]
        %v889 = vsel %vm440, %v878, 0
        %891 = vmatprep.subr.mxu0 0.0
        %892 = vmatpush1.msra.mxu0 0.0
        %893 = vmatprep.subr.mxu0 0.0
        %894 = vmatpush1.msra.mxu0 0.0
        %895 = vmatprep.subr.mxu0 0.0
        %896 = vmatpush1.msra.mxu0 0.0
        %897 = vmatprep.subr.mxu0 0.0
        %898 = vmatpush1.msra.mxu0 0.0
        %899 = vmatprep.subr.mxu0 0.0
        %900 = vmatpush1.msra.mxu0 0.0
        %901 = vmatprep.subr.mxu0 0.0
        %902 = vmatpush1.msra.mxu0 0.0
        %903 = vmatprep.subr.mxu0 0.0
        %904 = vmatpush1.msra.mxu0 0.0
        %905 = vmatprep.subr.mxu0 0.0
        %906 = vmatpush1.msra.mxu0 0.0
        %907 = vmatprep.subr.mxu0 0.0
        %908 = vmatpush1.msra.mxu0 0.0
        %909 = vmatprep.subr.mxu0 0.0
        %910 = vmatpush1.msra.mxu0 0.0
        %911 = vmatprep.subr.mxu0 0.0
        %912 = vmatpush1.msra.mxu0 0.0
        %913 = vmatprep.subr.mxu0 0.0
        %914 = vmatpush1.msra.mxu0 0.0
        %915 = vmatprep.subr.mxu0 0.0
        %916 = vmatpush1.msra.mxu0 %v433
        %917 = vmatprep.subr.mxu0 0.0
        %918 = vmatpush1.msra.mxu0 %v432
        %919 = vmatprep.subr.mxu0 0.0
        %920 = vmatpush1.msra.mxu0 %v431
        %921 = vmatprep.subr.mxu0 0.0
        %922 = vmatpush1.msra.mxu0 %v430
        %923 = vmatprep.subr.mxu0 0.0
        %924 = vmatpush2.msra.mxu0 0.0
        %925 = vmatprep.subr.mxu0 0.0
        %926 = vmatpush2.msra.mxu0 0.0
        %927 = vmatprep.subr.mxu0 0.0
        %928 = vmatpush2.msra.mxu0 0.0
        %929 = vmatprep.subr.mxu0 0.0
        %930 = vmatpush2.msra.mxu0 0.0
        %931 = vmatprep.subr.mxu0 0.0
        %932 = vmatpush2.msra.mxu0 0.0
        %933 = vmatprep.subr.mxu0 0.0
        %934 = vmatpush2.msra.mxu0 0.0
        %935 = vmatprep.subr.mxu0 0.0
        %936 = vmatpush2.msra.mxu0 0.0
        %937 = vmatprep.subr.mxu0 0.0
        %938 = vmatpush2.msra.mxu0 0.0
        %939 = vmatprep.subr.mxu0 0.0
        %940 = vmatpush2.msra.mxu0 0.0
        %941 = vmatprep.subr.mxu0 0.0
        %942 = vmatpush2.msra.mxu0 0.0
        %943 = vmatprep.subr.mxu0 0.0
        %944 = vmatpush2.msra.mxu0 0.0
        %945 = vmatprep.subr.mxu0 0.0
        %946 = vmatpush2.msra.mxu0 0.0
        %947 = vmatprep.subr.mxu0 0.0
        %948 = vmatpush2.msra.mxu0 0.0
        %949 = vmatprep.subr.mxu0 0.0
        %950 = vmatpush2.msra.mxu0 0.0
        %951 = vmatprep.subr.mxu0 0.0
        %952 = vmatpush2.msra.mxu0 0.0
        %953 = vmatprep.subr.mxu0 0.0
        %954 = vmatpush2.msra.mxu0 0.0
        %955 = vmatprep.mubr.f32.mxu0 0.0
        %956 = vmatmul.mubr.f32.gmra.mxu0 %v889
        %v957 = vpop.f32.mrf.mxu0
        %v958 = vadd.f32 0.0, %v957
        %v959 = vpop.f32.mrf.mxu0
        %960 = vdwg.mxu0
        %v961 = vadd.f32 %v888, %v958
        %v962 = vmul.f32 %v961, 0.5
        %v963 = vtanh.pop %v962
        %v964 = vmul.f32 %v963, 0.5
        %v965 = vadd.f32 %v964, 0.5
        %v966 = vtanh.pop %v961
        %v967 = vmul.f32 %v965, %v866
        %969 = vrot.lane.b32.xlu0 %v966, 64
        %v970 = vpop.permute.xlu0 %969
        %v972 = vmul.f32 %v965, %v970
        %974 = vrot.lane.b32.xlu0 %v972, 32
        %v975 = vpop.permute.xlu0 %974
        %v977 = vadd.f32 %v967, %v975
        %v978 = vtanh.pop %v977
        %980 = vrot.lane.b32.xlu0 %v978, 64
        %v981 = vpop.permute.xlu0 %980
        %v983 = vmul.f32 %v965, %v981
        %s984 = sadd.s32 %s435, 4
        %v985 = vstv %s984
        %vm986 = vcmp.gt.s32.totalorder %v434, %v985
        %988 = vrot.lane.b32.xlu0 %v983, 32
        %v989 = vpop.permute.xlu0 %988
        %v991 = vadd.f32 %v886, %v989
        %v992 = vsel %vm986, 1, 0
        %993 = vset.pattern.permute.xlu0 0
        %994 = vperm.xlu0 %993, %v992
        %v995 = vpop.permute.xlu0 %994
        %vm996 = vcmp.eq.s32.totalorder %v995, 1
        %v997 = vsel %vm996, %v991, %v886
        %s998 = scalar_lea.vmem [#allocation2], 40
        %v999 = vld [vmem:[%s998] sm:$0xff]
        %v1000 = vsel %vm440, %v989, 0
        %1002 = vmatprep.subr.mxu0 0.0
        %1003 = vmatpush1.msra.mxu0 0.0
        %1004 = vmatprep.subr.mxu0 0.0
        %1005 = vmatpush1.msra.mxu0 0.0
        %1006 = vmatprep.subr.mxu0 0.0
        %1007 = vmatpush1.msra.mxu0 0.0
        %1008 = vmatprep.subr.mxu0 0.0
        %1009 = vmatpush1.msra.mxu0 0.0
        %1010 = vmatprep.subr.mxu0 0.0
        %1011 = vmatpush1.msra.mxu0 0.0
        %1012 = vmatprep.subr.mxu0 0.0
        %1013 = vmatpush1.msra.mxu0 0.0
        %1014 = vmatprep.subr.mxu0 0.0
        %1015 = vmatpush1.msra.mxu0 0.0
        %1016 = vmatprep.subr.mxu0 0.0
        %1017 = vmatpush1.msra.mxu0 0.0
        %1018 = vmatprep.subr.mxu0 0.0
        %1019 = vmatpush1.msra.mxu0 0.0
        %1020 = vmatprep.subr.mxu0 0.0
        %1021 = vmatpush1.msra.mxu0 0.0
        %1022 = vmatprep.subr.mxu0 0.0
        %1023 = vmatpush1.msra.mxu0 0.0
        %1024 = vmatprep.subr.mxu0 0.0
        %1025 = vmatpush1.msra.mxu0 0.0
        %1026 = vmatprep.subr.mxu0 0.0
        %1027 = vmatpush1.msra.mxu0 %v433
        %1028 = vmatprep.subr.mxu0 0.0
        %1029 = vmatpush1.msra.mxu0 %v432
        %1030 = vmatprep.subr.mxu0 0.0
        %1031 = vmatpush1.msra.mxu0 %v431
        %1032 = vmatprep.subr.mxu0 0.0
        %1033 = vmatpush1.msra.mxu0 %v430
        %1034 = vmatprep.subr.mxu0 0.0
        %1035 = vmatpush2.msra.mxu0 0.0
        %1036 = vmatprep.subr.mxu0 0.0
        %1037 = vmatpush2.msra.mxu0 0.0
        %1038 = vmatprep.subr.mxu0 0.0
        %1039 = vmatpush2.msra.mxu0 0.0
        %1040 = vmatprep.subr.mxu0 0.0
        %1041 = vmatpush2.msra.mxu0 0.0
        %1042 = vmatprep.subr.mxu0 0.0
        %1043 = vmatpush2.msra.mxu0 0.0
        %1044 = vmatprep.subr.mxu0 0.0
        %1045 = vmatpush2.msra.mxu0 0.0
        %1046 = vmatprep.subr.mxu0 0.0
        %1047 = vmatpush2.msra.mxu0 0.0
        %1048 = vmatprep.subr.mxu0 0.0
        %1049 = vmatpush2.msra.mxu0 0.0
        %1050 = vmatprep.subr.mxu0 0.0
        %1051 = vmatpush2.msra.mxu0 0.0
        %1052 = vmatprep.subr.mxu0 0.0
        %1053 = vmatpush2.msra.mxu0 0.0
        %1054 = vmatprep.subr.mxu0 0.0
        %1055 = vmatpush2.msra.mxu0 0.0
        %1056 = vmatprep.subr.mxu0 0.0
        %1057 = vmatpush2.msra.mxu0 0.0
        %1058 = vmatprep.subr.mxu0 0.0
        %1059 = vmatpush2.msra.mxu0 0.0
        %1060 = vmatprep.subr.mxu0 0.0
        %1061 = vmatpush2.msra.mxu0 0.0
        %1062 = vmatprep.subr.mxu0 0.0
        %1063 = vmatpush2.msra.mxu0 0.0
        %1064 = vmatprep.subr.mxu0 0.0
        %1065 = vmatpush2.msra.mxu0 0.0
        %1066 = vmatprep.mubr.f32.mxu0 0.0
        %1067 = vmatmul.mubr.f32.gmra.mxu0 %v1000
        %v1068 = vpop.f32.mrf.mxu0
        %v1069 = vadd.f32 0.0, %v1068
        %v1070 = vpop.f32.mrf.mxu0
        %1071 = vdwg.mxu0
        %v1072 = vadd.f32 %v999, %v1069
        %v1073 = vmul.f32 %v1072, 0.5
        %v1074 = vtanh.pop %v1073
        %v1075 = vmul.f32 %v1074, 0.5
        %v1076 = vadd.f32 %v1075, 0.5
        %v1077 = vtanh.pop %v1072
        %v1078 = vmul.f32 %v1076, %v977
        %1080 = vrot.lane.b32.xlu0 %v1077, 64
        %v1081 = vpop.permute.xlu0 %1080
        %v1083 = vmul.f32 %v1076, %v1081
        %1085 = vrot.lane.b32.xlu0 %v1083, 32
        %v1086 = vpop.permute.xlu0 %1085
        %v1088 = vadd.f32 %v1078, %v1086
        %v1089 = vtanh.pop %v1088
        %1091 = vrot.lane.b32.xlu0 %v1089, 64
        %v1092 = vpop.permute.xlu0 %1091
        %v1094 = vmul.f32 %v1076, %v1092
        %s1095 = sadd.s32 %s435, 5
        %v1096 = vstv %s1095
        %vm1097 = vcmp.gt.s32.totalorder %v434, %v1096
        %1099 = vrot.lane.b32.xlu0 %v1094, 32
        %v1100 = vpop.permute.xlu0 %1099
        %v1102 = vadd.f32 %v997, %v1100
        %v1103 = vsel %vm1097, 1, 0
        %1104 = vset.pattern.permute.xlu0 0
        %1105 = vperm.xlu0 %1104, %v1103
        %v1106 = vpop.permute.xlu0 %1105
        %vm1107 = vcmp.eq.s32.totalorder %v1106, 1
        %v1108 = vsel %vm1107, %v1102, %v997
        %s1109 = scalar_lea.vmem [#allocation2], 48
        %v1110 = vld [vmem:[%s1109] sm:$0xff]
        %v1111 = vsel %vm440, %v1100, 0
        %1113 = vmatprep.subr.mxu0 0.0
        %1114 = vmatpush1.msra.mxu0 0.0
        %1115 = vmatprep.subr.mxu0 0.0
        %1116 = vmatpush1.msra.mxu0 0.0
        %1117 = vmatprep.subr.mxu0 0.0
        %1118 = vmatpush1.msra.mxu0 0.0
        %1119 = vmatprep.subr.mxu0 0.0
        %1120 = vmatpush1.msra.mxu0 0.0
        %1121 = vmatprep.subr.mxu0 0.0
        %1122 = vmatpush1.msra.mxu0 0.0
        %1123 = vmatprep.subr.mxu0 0.0
        %1124 = vmatpush1.msra.mxu0 0.0
        %1125 = vmatprep.subr.mxu0 0.0
        %1126 = vmatpush1.msra.mxu0 0.0
        %1127 = vmatprep.subr.mxu0 0.0
        %1128 = vmatpush1.msra.mxu0 0.0
        %1129 = vmatprep.subr.mxu0 0.0
        %1130 = vmatpush1.msra.mxu0 0.0
        %1131 = vmatprep.subr.mxu0 0.0
        %1132 = vmatpush1.msra.mxu0 0.0
        %1133 = vmatprep.subr.mxu0 0.0
        %1134 = vmatpush1.msra.mxu0 0.0
        %1135 = vmatprep.subr.mxu0 0.0
        %1136 = vmatpush1.msra.mxu0 0.0
        %1137 = vmatprep.subr.mxu0 0.0
        %1138 = vmatpush1.msra.mxu0 %v433
        %1139 = vmatprep.subr.mxu0 0.0
        %1140 = vmatpush1.msra.mxu0 %v432
        %1141 = vmatprep.subr.mxu0 0.0
        %1142 = vmatpush1.msra.mxu0 %v431
        %1143 = vmatprep.subr.mxu0 0.0
        %1144 = vmatpush1.msra.mxu0 %v430
        %1145 = vmatprep.subr.mxu0 0.0
        %1146 = vmatpush2.msra.mxu0 0.0
        %1147 = vmatprep.subr.mxu0 0.0
        %1148 = vmatpush2.msra.mxu0 0.0
        %1149 = vmatprep.subr.mxu0 0.0
        %1150 = vmatpush2.msra.mxu0 0.0
        %1151 = vmatprep.subr.mxu0 0.0
        %1152 = vmatpush2.msra.mxu0 0.0
        %1153 = vmatprep.subr.mxu0 0.0
        %1154 = vmatpush2.msra.mxu0 0.0
        %1155 = vmatprep.subr.mxu0 0.0
        %1156 = vmatpush2.msra.mxu0 0.0
        %1157 = vmatprep.subr.mxu0 0.0
        %1158 = vmatpush2.msra.mxu0 0.0
        %1159 = vmatprep.subr.mxu0 0.0
        %1160 = vmatpush2.msra.mxu0 0.0
        %1161 = vmatprep.subr.mxu0 0.0
        %1162 = vmatpush2.msra.mxu0 0.0
        %1163 = vmatprep.subr.mxu0 0.0
        %1164 = vmatpush2.msra.mxu0 0.0
        %1165 = vmatprep.subr.mxu0 0.0
        %1166 = vmatpush2.msra.mxu0 0.0
        %1167 = vmatprep.subr.mxu0 0.0
        %1168 = vmatpush2.msra.mxu0 0.0
        %1169 = vmatprep.subr.mxu0 0.0
        %1170 = vmatpush2.msra.mxu0 0.0
        %1171 = vmatprep.subr.mxu0 0.0
        %1172 = vmatpush2.msra.mxu0 0.0
        %1173 = vmatprep.subr.mxu0 0.0
        %1174 = vmatpush2.msra.mxu0 0.0
        %1175 = vmatprep.subr.mxu0 0.0
        %1176 = vmatpush2.msra.mxu0 0.0
        %1177 = vmatprep.mubr.f32.mxu0 0.0
        %1178 = vmatmul.mubr.f32.gmra.mxu0 %v1111
        %v1179 = vpop.f32.mrf.mxu0
        %v1180 = vadd.f32 0.0, %v1179
        %v1181 = vpop.f32.mrf.mxu0
        %1182 = vdwg.mxu0
        %v1183 = vadd.f32 %v1110, %v1180
        %v1184 = vmul.f32 %v1183, 0.5
        %v1185 = vtanh.pop %v1184
        %v1186 = vmul.f32 %v1185, 0.5
        %v1187 = vadd.f32 %v1186, 0.5
        %v1188 = vtanh.pop %v1183
        %v1189 = vmul.f32 %v1187, %v1088
        %1191 = vrot.lane.b32.xlu0 %v1188, 64
        %v1192 = vpop.permute.xlu0 %1191
        %v1194 = vmul.f32 %v1187, %v1192
        %1196 = vrot.lane.b32.xlu0 %v1194, 32
        %v1197 = vpop.permute.xlu0 %1196
        %v1199 = vadd.f32 %v1189, %v1197
        %v1200 = vtanh.pop %v1199
        %1202 = vrot.lane.b32.xlu0 %v1200, 64
        %v1203 = vpop.permute.xlu0 %1202
        %v1205 = vmul.f32 %v1187, %v1203
        %s1206 = sadd.s32 %s435, 6
        %v1207 = vstv %s1206
        %vm1208 = vcmp.gt.s32.totalorder %v434, %v1207
        %1210 = vrot.lane.b32.xlu0 %v1205, 32
        %v1211 = vpop.permute.xlu0 %1210
        %v1213 = vadd.f32 %v1108, %v1211
        %v1214 = vsel %vm1208, 1, 0
        %1215 = vset.pattern.permute.xlu0 0
        %1216 = vperm.xlu0 %1215, %v1214
        %v1217 = vpop.permute.xlu0 %1216
        %vm1218 = vcmp.eq.s32.totalorder %v1217, 1
        %v1219 = vsel %vm1218, %v1213, %v1108
        %s1220 = scalar_lea.vmem [#allocation2], 56
        %v1221 = vld [vmem:[%s1220] sm:$0xff]
        %v1222 = vsel %vm440, %v1211, 0
        %1224 = vmatprep.subr.mxu0 0.0
        %1225 = vmatpush1.msra.mxu0 0.0
        %1226 = vmatprep.subr.mxu0 0.0
        %1227 = vmatpush1.msra.mxu0 0.0
        %1228 = vmatprep.subr.mxu0 0.0
        %1229 = vmatpush1.msra.mxu0 0.0
        %1230 = vmatprep.subr.mxu0 0.0
        %1231 = vmatpush1.msra.mxu0 0.0
        %1232 = vmatprep.subr.mxu0 0.0
        %1233 = vmatpush1.msra.mxu0 0.0
        %1234 = vmatprep.subr.mxu0 0.0
        %1235 = vmatpush1.msra.mxu0 0.0
        %1236 = vmatprep.subr.mxu0 0.0
        %1237 = vmatpush1.msra.mxu0 0.0
        %1238 = vmatprep.subr.mxu0 0.0
        %1239 = vmatpush1.msra.mxu0 0.0
        %1240 = vmatprep.subr.mxu0 0.0
        %1241 = vmatpush1.msra.mxu0 0.0
        %1242 = vmatprep.subr.mxu0 0.0
        %1243 = vmatpush1.msra.mxu0 0.0
        %1244 = vmatprep.subr.mxu0 0.0
        %1245 = vmatpush1.msra.mxu0 0.0
        %1246 = vmatprep.subr.mxu0 0.0
        %1247 = vmatpush1.msra.mxu0 0.0
        %1248 = vmatprep.subr.mxu0 0.0
        %1249 = vmatpush1.msra.mxu0 %v433
        %1250 = vmatprep.subr.mxu0 0.0
        %1251 = vmatpush1.msra.mxu0 %v432
        %1252 = vmatprep.subr.mxu0 0.0
        %1253 = vmatpush1.msra.mxu0 %v431
        %1254 = vmatprep.subr.mxu0 0.0
        %1255 = vmatpush1.msra.mxu0 %v430
        %1256 = vmatprep.subr.mxu0 0.0
        %1257 = vmatpush2.msra.mxu0 0.0
        %1258 = vmatprep.subr.mxu0 0.0
        %1259 = vmatpush2.msra.mxu0 0.0
        %1260 = vmatprep.subr.mxu0 0.0
        %1261 = vmatpush2.msra.mxu0 0.0
        %1262 = vmatprep.subr.mxu0 0.0
        %1263 = vmatpush2.msra.mxu0 0.0
        %1264 = vmatprep.subr.mxu0 0.0
        %1265 = vmatpush2.msra.mxu0 0.0
        %1266 = vmatprep.subr.mxu0 0.0
        %1267 = vmatpush2.msra.mxu0 0.0
        %1268 = vmatprep.subr.mxu0 0.0
        %1269 = vmatpush2.msra.mxu0 0.0
        %1270 = vmatprep.subr.mxu0 0.0
        %1271 = vmatpush2.msra.mxu0 0.0
        %1272 = vmatprep.subr.mxu0 0.0
        %1273 = vmatpush2.msra.mxu0 0.0
        %1274 = vmatprep.subr.mxu0 0.0
        %1275 = vmatpush2.msra.mxu0 0.0
        %1276 = vmatprep.subr.mxu0 0.0
        %1277 = vmatpush2.msra.mxu0 0.0
        %1278 = vmatprep.subr.mxu0 0.0
        %1279 = vmatpush2.msra.mxu0 0.0
        %1280 = vmatprep.subr.mxu0 0.0
        %1281 = vmatpush2.msra.mxu0 0.0
        %1282 = vmatprep.subr.mxu0 0.0
        %1283 = vmatpush2.msra.mxu0 0.0
        %1284 = vmatprep.subr.mxu0 0.0
        %1285 = vmatpush2.msra.mxu0 0.0
        %1286 = vmatprep.subr.mxu0 0.0
        %1287 = vmatpush2.msra.mxu0 0.0
        %1288 = vmatprep.mubr.f32.mxu0 0.0
        %1289 = vmatmul.mubr.f32.gmra.mxu0 %v1222
        %v1290 = vpop.f32.mrf.mxu0
        %v1291 = vadd.f32 0.0, %v1290
        %v1292 = vpop.f32.mrf.mxu0
        %1293 = vdwg.mxu0
        %v1294 = vadd.f32 %v1221, %v1291
        %v1295 = vmul.f32 %v1294, 0.5
        %v1296 = vtanh.pop %v1295
        %v1297 = vmul.f32 %v1296, 0.5
        %v1298 = vadd.f32 %v1297, 0.5
        %v1299 = vtanh.pop %v1294
        %v1300 = vmul.f32 %v1298, %v1199
        %1302 = vrot.lane.b32.xlu0 %v1299, 64
        %v1303 = vpop.permute.xlu0 %1302
        %v1305 = vmul.f32 %v1298, %v1303
        %1307 = vrot.lane.b32.xlu0 %v1305, 32
        %v1308 = vpop.permute.xlu0 %1307
        %v1310 = vadd.f32 %v1300, %v1308
        %v1311 = vtanh.pop %v1310
        %1313 = vrot.lane.b32.xlu0 %v1311, 64
        %v1314 = vpop.permute.xlu0 %1313
        %v1316 = vmul.f32 %v1298, %v1314
        %s1317 = sadd.s32 %s435, 7
        %v1318 = vstv %s1317
        %vm1319 = vcmp.gt.s32.totalorder %v434, %v1318
        %1321 = vrot.lane.b32.xlu0 %v1316, 32
        %v1322 = vpop.permute.xlu0 %1321
        %v1324 = vadd.f32 %v1219, %v1322
        %v1325 = vsel %vm1319, 1, 0
        %1326 = vset.pattern.permute.xlu0 0
        %1327 = vperm.xlu0 %1326, %v1325
        %v1328 = vpop.permute.xlu0 %1327
        %vm1329 = vcmp.eq.s32.totalorder %v1328, 1
        %v1330 = vsel %vm1329, %v1324, %v1219
        %1331 = vst.msk [vmem:[#allocation3] sm:$0xff] %vm440, %v1322
        %1333 = vrot.lane.b32.xlu0 %v1310, 96
        %v1334 = vpop.permute.xlu0 %1333
        %1336 = vst.msk [vmem:[#allocation4] sm:$0xff] %vm440, %v1334
        %1337 = vst.msk [vmem:[#allocation5] sm:$0xff] %vm440, %v1330
        %p1338 = scmp.eq.s32.totalorder %s22, 1
        // Predicated region
        $region45: #{tpu_custom_call.1} parent=39 // pred_check
          %p1339 = pneg %p1338
        $region46: #{tpu_custom_call.1} parent=39 // pred_check_branch
          %1341 = sbr.rel (%p1339) target = $region48
        $region47: #{tpu_custom_call.1} parent=39 // pred_region
          %v1342 = vcvt.s32.f32 %v434
          %v1343 = vmax.f32 %v1342, 1.0
          %v1344 = vrcp.pop %v1343
          %v1345 = vmul.f32 1.0, %v1344
          %1347 = vset.pattern.permute.xlu0 0
          %1348 = vperm.xlu0 %1347, %v1345
          %v1349 = vpop.permute.xlu0 %1348
          %v1351 = vmul.f32 %v1330, %v1349
          %1352 = vst.msk [vmem:[#allocation5] sm:$0xff] %vm440, %v1351
        $region48: #{tpu_custom_call.1} parent=39 // pred_fallthru
          _
        // Predicated region
        $region49: #{tpu_custom_call.1} parent=39 // pred_check
          %p1353 = pneg %p164
        $region50: #{tpu_custom_call.1} parent=39 // pred_check_branch
          %1355 = sbr.rel (%p1353) target = $region52
        $region51: #{tpu_custom_call.1} parent=39 // pred_region
          %s1357 = ssub.s32 128, 128
          %1358 = vsyncadd [#allocation6], %s1357
          %s1359 = smul.addr %s21, 128
          %s1360 = scalar_lea.hbm %s5, %s1359
          %s1362 = sshll.u32 [#allocation5], 4
          %s1363 = int_to_ptr.vmem [resolvable:$true] %s1362
          %1365 = dma.vmem_to_hbm [thread:$0]  %s1363, 128, %s1360, [#allocation6]
        $region52: #{tpu_custom_call.1} parent=39 // pred_fallthru
          _
        // Predicated region
        $region53: #{tpu_custom_call.1} parent=39 // pred_check
          %p1366 = pneg %p164
        $region54: #{tpu_custom_call.1} parent=39 // pred_check_branch
          %1368 = sbr.rel (%p1366) target = $region56
        $region55: #{tpu_custom_call.1} parent=39 // pred_region
          %1369 = dma.done [#allocation6], 128
        $region56: #{tpu_custom_call.1} parent=39 // pred_fallthru
          _
      $region40: #{tpu_custom_call.1} parent=5 // pred_fallthru
        _
      %p1370 = scmp.le.s32.totalorder 2, %s12
      // Predicated region
      $region57: #{tpu_custom_call.1} parent=5 // pred_check
        %p1371 = pneg %p1370
      $region58: #{tpu_custom_call.1} parent=5 // pred_check_branch
        %1373 = sbr.rel (%p1371) target = $region60
      $region59: #{tpu_custom_call.1} parent=5 // pred_region
        %s1374 = ssub.s32 %s12, 2
      $region60: #{tpu_custom_call.1} parent=5 // pred_fallthru
        _
    $region6: #{tpu_custom_call.1} parent=1 // loop_footer
      %s16 = sadd.s32 1, %s12
    $region7: #{tpu_custom_call.1} parent=1 // loop_footer_branch
      %11 = sbr.rel target = $region3
    $region8: #{tpu_custom_call.1} parent=1 // loop_exit
      _
    %1375 = vsyncpa [#allocation6], 1
    %s1376 = scalar_lea.sflag [#allocation6], 1
    %1377 = vsyncpa %s1376, 1

</llo_original>
